<compile_context>
chip_gen: v7x
topology: tpu7x:2x2x1
jax: 0.10.0
libtpu: 0.0.40
codegen_flags: <defaults>
</compile_context>

<pallas_src>
import functools

import jax
import jax.numpy as jnp
from jax.experimental import pallas as pl
from jax.experimental.pallas import tpu as pltpu

LANES = 128


def _round_up(x, m):
    return (x + m - 1) // m * m


def _pad_last(x, to):
    pad = to - x.shape[-1]
    if pad == 0:
        return x
    cfg = [(0, 0)] * (x.ndim - 1) + [(0, pad)]
    return jnp.pad(x, cfg)


def _border_masks(h, w):
    """(9, h*w, 1) f32: 1 where the (dy,dx)-shifted read stays inside the image."""
    ii = jnp.arange(h * w, dtype=jnp.int32) // w
    jj = jnp.arange(h * w, dtype=jnp.int32) % w
    rows = []
    for dy in (-1, 0, 1):
        for dx in (-1, 0, 1):
            ok = (ii + dy >= 0) & (ii + dy < h) & (jj + dx >= 0) & (jj + dx < w)
            rows.append(ok.astype(jnp.float32))
    return jnp.stack(rows)[:, :, None]


# ----------------------------------------------------------------------------
# Fused per-level kernel: 1x1 lateral (+ fused nearest upsample add) + 3x3 conv
# ----------------------------------------------------------------------------
def _fpn_level_kernel(h, w, fh, fw, has_td, *refs):
    if has_td:
        (x_ref, td_ref, w1_ref, b1_ref, w3_ref, b3_ref, m_ref,
         li_ref, out_ref, lat_sc) = refs
    else:
        (x_ref, w1_ref, b1_ref, w3_ref, b3_ref, m_ref,
         li_ref, out_ref, lat_sc) = refs
        td_ref = None
    hw = h * w
    cp = w1_ref.shape[1]

    # ---- lateral 1x1 conv: bf16 MXU matmul over channels, f32 acc + bias ----
    lat = jnp.dot(x_ref[0], w1_ref[...], preferred_element_type=jnp.float32)
    lat = lat + b1_ref[...]

    # ---- fused nearest-neighbour upsample of the coarser top-down map ----
    if has_td:
        td = td_ref[0].astype(jnp.float32)          # (Hp, Wp, Cp)
        if fh > 1:
            td = jnp.repeat(td, fh, axis=0)
        if fw > 1:
            td = jnp.repeat(td, fw, axis=1)
        lat = lat + td.reshape(hw, cp)

    lat_sc[...] = lat                                # f32 copy for the 3x3 taps
    li_ref[...] = lat.astype(li_ref.dtype)[None]     # bf16 top-down output

    # ---- 3x3 "same" conv: 9 rolled (XLU) matmuls, border-masked, ----
    # ---- accumulated directly into the VMEM-resident f32 output block ----
    out_ref[...] = jnp.broadcast_to(b3_ref[...], (hw, cp))[None]
    tap = 0
    for dy in (-1, 0, 1):
        for dx in (-1, 0, 1):
            delta = dy * w + dx
            src = lat_sc[...]
            if delta != 0:
                src = pltpu.roll(src, shift=(-delta) % hw, axis=0)  # sublane shift
                src = src * m_ref[tap]                              # zero the borders
            out_ref[...] += jnp.dot(src.astype(jnp.bfloat16), w3_ref[tap],
                                    preferred_element_type=jnp.float32)[None]
            tap += 1


def _fpn_level(x_flat, td4, w1, b1, w3, b3, masks, h, w, fh, fw):
    n, hw, cip = x_flat.shape
    cp = w1.shape[1]
    has_td = td4 is not None
    kern = functools.partial(_fpn_level_kernel, h, w, fh, fw, has_td)

    in_specs = [pl.BlockSpec((1, hw, cip), lambda i: (i, 0, 0))]
    inputs = [x_flat]
    if has_td:
        hp, wp = td4.shape[1], td4.shape[2]
        in_specs.append(pl.BlockSpec((1, hp, wp, cp), lambda i: (i, 0, 0, 0)))
        inputs.append(td4)
    in_specs += [
        pl.BlockSpec((cip, cp), lambda i: (0, 0)),
        pl.BlockSpec((1, cp), lambda i: (0, 0)),
        pl.BlockSpec((9, cp, cp), lambda i: (0, 0, 0)),
        pl.BlockSpec((1, cp), lambda i: (0, 0)),
        pl.BlockSpec((9, hw, 1), lambda i: (0, 0, 0)),
    ]
    inputs += [w1, b1, w3, b3, masks]

    li, out = pl.pallas_call(
        kern,
        grid=(n,),
        in_specs=in_specs,
        out_specs=(pl.BlockSpec((1, hw, cp), lambda i: (i, 0, 0)),
                   pl.BlockSpec((1, hw, cp), lambda i: (i, 0, 0))),
        out_shape=(jax.ShapeDtypeStruct((n, hw, cp), jnp.bfloat16),   # last_inner
                   jax.ShapeDtypeStruct((n, hw, cp), jnp.float32)),   # level output
        scratch_shapes=[pltpu.VMEM((hw, cp), jnp.float32)],
        compiler_params=pltpu.CompilerParams(
            dimension_semantics=("parallel",),
            vmem_limit_bytes=48 * 1024 * 1024),
    )(*inputs)
    return li, out


# ----------------------------------------------------------------------------
# FPN forward (edges: NCHW<->NHWC, lane padding, per-level kernel calls)
# ----------------------------------------------------------------------------
def fpn_forward(feats_nchw, params):
    num = len(feats_nchw)
    cout = params["inner_b"][0].shape[0]
    cp = _round_up(cout, LANES)

    # parameters: lane-pad Cin/Cout to 128, cast to bf16, (3,3,..)->(9,..)
    w1s, b1s, w3s, b3s = [], [], [], []
    for lvl in range(num):
        cin = params["inner_w"][lvl].shape[0]
        cip = _round_up(cin, LANES)
        w1 = jnp.zeros((cip, cp), jnp.float32).at[:cin, :cout].set(
            params["inner_w"][lvl])
        w3 = jnp.zeros((3, 3, cp, cp), jnp.float32).at[:, :, :cout, :cout].set(
            params["layer_w"][lvl])
        w1s.append(w1.astype(jnp.bfloat16))
        w3s.append(w3.reshape(9, cp, cp).astype(jnp.bfloat16))
        b1s.append(_pad_last(params["inner_b"][lvl], cp).reshape(1, cp))
        b3s.append(_pad_last(params["layer_b"][lvl], cp).reshape(1, cp))

    # features: NCHW -> NHWC, lane-pad Cin, bf16, flatten HxW (free reshape)
    xs, shapes = [], []
    for f in feats_nchw:
        n, cin, h, wd = f.shape
        cip = _round_up(cin, LANES)
        x = jnp.transpose(f, (0, 2, 3, 1))
        x = _pad_last(x, cip).astype(jnp.bfloat16).reshape(n, h * wd, cip)
        xs.append(x)
        shapes.append((n, h, wd))

    # top-down pass, coarsest -> finest, one fused pallas_call per level
    results = [None] * num
    n, h, wd = shapes[-1]
    li, out = _fpn_level(xs[-1], None, w1s[-1], b1s[-1], w3s[-1], b3s[-1],
                         _border_masks(h, wd), h, wd, 1, 1)
    results[-1] = out
    ph, pw = h, wd
    for lvl in range(num - 2, -1, -1):
        n, h, wd = shapes[lvl]
        td4 = li.reshape(n, ph, pw, cp)
        if h % ph == 0 and wd % pw == 0:
            fh, fw = h // ph, wd // pw
        else:
            # TODO(synk): non-integer nearest-upsample factor falls back to an
            # XLA gather outside the kernel (not hit for standard FPN pyramids).
            rows = jnp.arange(h) * ph // h
            cols = jnp.arange(wd) * pw // wd
            td4 = td4[:, rows][:, :, cols]
            fh = fw = 1
        li, out = _fpn_level(xs[lvl], td4, w1s[lvl], b1s[lvl], w3s[lvl], b3s[lvl],
                             _border_masks(h, wd), h, wd, fh, fw)
        results[lvl] = out
        ph, pw = h, wd

    # un-flatten, drop lane padding, back to NCHW (PyTorch output convention)
    outs = {}
    for lvl in range(num):
        n, h, wd = shapes[lvl]
        r = results[lvl].reshape(n, h, wd, cp)[..., :cout]
        outs[f"feat{lvl}"] = jnp.transpose(r, (0, 3, 1, 2))
    return outs


# ----------------------------------------------------------------------------
# Pure-JAX f32 reference (lax.conv) for correctness check
# ----------------------------------------------------------------------------
def _ref_fpn(feats_nchw, params):
    def conv1x1(x, w, b):
        wk = jnp.transpose(w, (1, 0))[:, :, None, None]          # OIHW
        y = jax.lax.conv_general_dilated(
            x, wk, (1, 1), "SAME", dimension_numbers=("NCHW", "OIHW", "NCHW"))
        return y + b[None, :, None, None]

    def conv3x3(x, w, b):
        wk = jnp.transpose(w, (3, 2, 0, 1))                       # OIHW
        y = jax.lax.conv_general_dilated(
            x, wk, (1, 1), "SAME", dimension_numbers=("NCHW", "OIHW", "NCHW"))
        return y + b[None, :, None, None]

    num = len(feats_nchw)
    last = conv1x1(feats_nchw[-1], params["inner_w"][-1], params["inner_b"][-1])
    results = [conv3x3(last, params["layer_w"][-1], params["layer_b"][-1])]
    for idx in range(num - 2, -1, -1):
        lat = conv1x1(feats_nchw[idx], params["inner_w"][idx], params["inner_b"][idx])
        h, wd = lat.shape[-2], lat.shape[-1]
        rows = jnp.arange(h) * last.shape[-2] // h
        cols = jnp.arange(wd) * last.shape[-1] // wd
        td = last[:, :, rows][:, :, :, cols]
        last = lat + td
        results.insert(0, conv3x3(last, params["layer_w"][idx], params["layer_b"][idx]))
    return {f"feat{i}": r for i, r in enumerate(results)}


if __name__ == "__main__":
    key = jax.random.PRNGKey(0)
    in_channels_list = [4, 8, 12]
    out_channels = 8
    batch = 2

    # deterministic synthetic parameters (shapes from FeaturePyramidNetwork.__init__)
    inner_w, inner_b, layer_w, layer_b = [], [], [], []
    for cin in in_channels_list:
        key, k1, k2, k3, k4 = jax.random.split(key, 5)
        inner_w.append(jax.random.normal(k1, (cin, out_channels), jnp.float32) * 0.1)
        inner_b.append(jax.random.normal(k2, (out_channels,), jnp.float32) * 0.01)
        layer_w.append(
            jax.random.normal(k3, (3, 3, out_channels, out_channels), jnp.float32) * 0.1)
        layer_b.append(jax.random.normal(k4, (out_channels,), jnp.float32) * 0.01)
    params = {
        "out_channels": out_channels,
        "inner_w": inner_w, "inner_b": inner_b,
        "layer_w": layer_w, "layer_b": layer_b,
    }

    # deterministic inputs (NCHW, like the PyTorch module)
    key, ka, kb, kc = jax.random.split(key, 4)
    feat0 = jax.random.uniform(ka, (batch, in_channels_list[0], 16, 16), jnp.float32)
    feat1 = jax.random.uniform(kb, (batch, in_channels_list[1], 8, 8), jnp.float32)
    feat2 = jax.random.uniform(kc, (batch, in_channels_list[2], 4, 4), jnp.float32)
    feats = [feat0, feat1, feat2]

    out = fpn_forward(feats, params)
    out = jax.tree_util.tree_map(jax.block_until_ready, out)

    # f32 reference; kernel uses bf16 MXU operands (f32 accumulation) so the
    # tolerance is loosened accordingly (~0.5% relative expected, checked at 3e-2).
    ref = _ref_fpn(feats, params)
    for k in ("feat0", "feat1", "feat2"):
        assert out[k].shape == (batch, out_channels) + feats[int(k[-1])].shape[2:]
        assert jnp.allclose(out[k], ref[k], atol=3e-2, rtol=3e-2), k

    print("KERNEL_OK")
</pallas_src>

<mosaic_0001>
module attributes {stable_mosaic.version = 11 : i64} {
  func.func @_fpn_level_kernel(%arg0: i32, %arg1: memref<1x16x128xbf16, #tpu.memory_space<vmem>>, %arg2: memref<128x128xbf16, #tpu.memory_space<vmem>>, %arg3: memref<1x128xf32, #tpu.memory_space<vmem>>, %arg4: memref<9x128x128xbf16, #tpu.memory_space<vmem>>, %arg5: memref<1x128xf32, #tpu.memory_space<vmem>>, %arg6: memref<9x16x1xf32, #tpu.memory_space<vmem>>, %arg7: memref<1x16x128xbf16, #tpu.memory_space<vmem>>, %arg8: memref<1x16x128xf32, #tpu.memory_space<vmem>>, %arg9: memref<16x128xf32, #tpu.memory_space<vmem>>) attributes {dimension_semantics = [#tpu.dimension_semantics<parallel>], iteration_bounds = array<i64: 2>, scalar_prefetch = 0 : i64, scratch_operands = 1 : i64, tpu.core_type = #tpu.core_type<tc>, window_params = [{transform_indices = @transform_0, window_bounds = array<i64: 1, 16, 128>}, {pipeline_mode = #tpu.pipeline_mode<synchronous>, transform_indices = @transform_1, window_bounds = array<i64: 128, 128>}, {pipeline_mode = #tpu.pipeline_mode<synchronous>, transform_indices = @transform_2, window_bounds = array<i64: 1, 128>}, {pipeline_mode = #tpu.pipeline_mode<synchronous>, transform_indices = @transform_3, window_bounds = array<i64: 9, 128, 128>}, {pipeline_mode = #tpu.pipeline_mode<synchronous>, transform_indices = @transform_4, window_bounds = array<i64: 1, 128>}, {pipeline_mode = #tpu.pipeline_mode<synchronous>, transform_indices = @transform_5, window_bounds = array<i64: 9, 16, 1>}, {transform_indices = @transform_6, window_bounds = array<i64: 1, 16, 128>}, {transform_indices = @transform_7, window_bounds = array<i64: 1, 16, 128>}]} {
    %c0 = arith.constant 0 : index
    %c0_0 = arith.constant 0 : index
    %c0_1 = arith.constant 0 : index
    %0 = vector.load %arg1[%c0, %c0_0, %c0_1] : memref<1x16x128xbf16, #tpu.memory_space<vmem>>, vector<1x16x128xbf16>
    %1 = vector.shape_cast %0 : vector<1x16x128xbf16> to vector<16x128xbf16>
    %c0_2 = arith.constant 0 : index
    %c0_3 = arith.constant 0 : index
    %2 = vector.load %arg2[%c0_2, %c0_3] : memref<128x128xbf16, #tpu.memory_space<vmem>>, vector<128x128xbf16>
    %cst = arith.constant dense<0.000000e+00> : vector<16x128xf32>
    %3 = tpu.matmul %1, %2, %cst {dimension_numbers = #tpu.dot_dimension_numbers<[1], [0], [0], [1], [0, 0, 1, 1], [], []>} : vector<16x128xbf16>, vector<128x128xbf16>, vector<16x128xf32> -> vector<16x128xf32>
    %c0_4 = arith.constant 0 : index
    %c0_5 = arith.constant 0 : index
    %4 = vector.load %arg3[%c0_4, %c0_5] : memref<1x128xf32, #tpu.memory_space<vmem>>, vector<1x128xf32>
    %5 = vector.broadcast %4 : vector<1x128xf32> to vector<16x128xf32>
    %6 = arith.addf %3, %5 : vector<16x128xf32>
    %c0_6 = arith.constant 0 : index
    %c0_7 = arith.constant 0 : index
    %7 = vector.load %arg9[%c0_6, %c0_7] : memref<16x128xf32, #tpu.memory_space<vmem>>, vector<16x128xf32>
    tpu.vector_store %arg9[%c0_6, %c0_7], %6 {strides = array<i32>} : memref<16x128xf32, #tpu.memory_space<vmem>>, vector<16x128xf32>,
    %8 = arith.truncf %6 : vector<16x128xf32> to vector<16x128xbf16>
    %9 = vector.shape_cast %8 : vector<16x128xbf16> to vector<1x16x128xbf16>
    %c0_8 = arith.constant 0 : index
    %c0_9 = arith.constant 0 : index
    %c0_10 = arith.constant 0 : index
    %10 = vector.load %arg7[%c0_8, %c0_9, %c0_10] : memref<1x16x128xbf16, #tpu.memory_space<vmem>>, vector<1x16x128xbf16>
    tpu.vector_store %arg7[%c0_8, %c0_9, %c0_10], %9 {strides = array<i32>} : memref<1x16x128xbf16, #tpu.memory_space<vmem>>, vector<1x16x128xbf16>,
    %c0_11 = arith.constant 0 : index
    %c0_12 = arith.constant 0 : index
    %11 = vector.load %arg5[%c0_11, %c0_12] : memref<1x128xf32, #tpu.memory_space<vmem>>, vector<1x128xf32>
    %12 = vector.shape_cast %11 : vector<1x128xf32> to vector<1x128xf32>
    %13 = vector.broadcast %12 : vector<1x128xf32> to vector<16x128xf32>
    %14 = vector.shape_cast %13 : vector<16x128xf32> to vector<1x16x128xf32>
    %c0_13 = arith.constant 0 : index
    %c0_14 = arith.constant 0 : index
    %c0_15 = arith.constant 0 : index
    %15 = vector.load %arg8[%c0_13, %c0_14, %c0_15] : memref<1x16x128xf32, #tpu.memory_space<vmem>>, vector<1x16x128xf32>
    tpu.vector_store %arg8[%c0_13, %c0_14, %c0_15], %14 {strides = array<i32>} : memref<1x16x128xf32, #tpu.memory_space<vmem>>, vector<1x16x128xf32>,
    %c0_16 = arith.constant 0 : index
    %c0_17 = arith.constant 0 : index
    %16 = vector.load %arg9[%c0_16, %c0_17] : memref<16x128xf32, #tpu.memory_space<vmem>>, vector<16x128xf32>
    %c5_i32 = arith.constant 5 : i32
    %17 = tpu.dynamic_rotate %16 by %c5_i32 dim 0 : vector<16x128xf32>, i32 -> vector<16x128xf32>
    %c0_18 = arith.constant 0 : index
    %c0_19 = arith.constant 0 : index
    %c0_20 = arith.constant 0 : index
    %18 = vector.load %arg6[%c0_18, %c0_19, %c0_20] : memref<9x16x1xf32, #tpu.memory_space<vmem>>, vector<1x16x1xf32>
    %19 = vector.shape_cast %18 : vector<1x16x1xf32> to vector<16x1xf32>
    %20 = vector.broadcast %19 : vector<16x1xf32> to vector<16x128xf32>
    %21 = arith.mulf %17, %20 : vector<16x128xf32>
    %c0_21 = arith.constant 0 : index
    %c0_22 = arith.constant 0 : index
    %c0_23 = arith.constant 0 : index
    %22 = vector.load %arg8[%c0_21, %c0_22, %c0_23] : memref<1x16x128xf32, #tpu.memory_space<vmem>>, vector<1x16x128xf32>
    %23 = arith.truncf %21 : vector<16x128xf32> to vector<16x128xbf16>
    %c0_24 = arith.constant 0 : index
    %c0_25 = arith.constant 0 : index
    %c0_26 = arith.constant 0 : index
    %24 = vector.load %arg4[%c0_24, %c0_25, %c0_26] : memref<9x128x128xbf16, #tpu.memory_space<vmem>>, vector<1x128x128xbf16>
    %25 = vector.shape_cast %24 : vector<1x128x128xbf16> to vector<128x128xbf16>
    %cst_27 = arith.constant dense<0.000000e+00> : vector<16x128xf32>
    %26 = tpu.matmul %23, %25, %cst_27 {dimension_numbers = #tpu.dot_dimension_numbers<[1], [0], [0], [1], [0, 0, 1, 1], [], []>} : vector<16x128xbf16>, vector<128x128xbf16>, vector<16x128xf32> -> vector<16x128xf32>
    %27 = vector.shape_cast %26 : vector<16x128xf32> to vector<1x16x128xf32>
    %28 = arith.addf %22, %27 : vector<1x16x128xf32>
    %c0_28 = arith.constant 0 : index
    %c0_29 = arith.constant 0 : index
    %c0_30 = arith.constant 0 : index
    %29 = vector.load %arg8[%c0_28, %c0_29, %c0_30] : memref<1x16x128xf32, #tpu.memory_space<vmem>>, vector<1x16x128xf32>
    tpu.vector_store %arg8[%c0_28, %c0_29, %c0_30], %28 {strides = array<i32>} : memref<1x16x128xf32, #tpu.memory_space<vmem>>, vector<1x16x128xf32>,
    %c0_31 = arith.constant 0 : index
    %c0_32 = arith.constant 0 : index
    %30 = vector.load %arg9[%c0_31, %c0_32] : memref<16x128xf32, #tpu.memory_space<vmem>>, vector<16x128xf32>
    %c4_i32 = arith.constant 4 : i32
    %31 = tpu.dynamic_rotate %30 by %c4_i32 dim 0 : vector<16x128xf32>, i32 -> vector<16x128xf32>
    %c1 = arith.constant 1 : index
    %c0_33 = arith.constant 0 : index
    %c0_34 = arith.constant 0 : index
    %32 = vector.load %arg6[%c1, %c0_33, %c0_34] : memref<9x16x1xf32, #tpu.memory_space<vmem>>, vector<1x16x1xf32>
    %33 = vector.shape_cast %32 : vector<1x16x1xf32> to vector<16x1xf32>
    %34 = vector.broadcast %33 : vector<16x1xf32> to vector<16x128xf32>
    %35 = arith.mulf %31, %34 : vector<16x128xf32>
    %c0_35 = arith.constant 0 : index
    %c0_36 = arith.constant 0 : index
    %c0_37 = arith.constant 0 : index
    %36 = vector.load %arg8[%c0_35, %c0_36, %c0_37] : memref<1x16x128xf32, #tpu.memory_space<vmem>>, vector<1x16x128xf32>
    %37 = arith.truncf %35 : vector<16x128xf32> to vector<16x128xbf16>
    %c1_38 = arith.constant 1 : index
    %c0_39 = arith.constant 0 : index
    %c0_40 = arith.constant 0 : index
    %38 = vector.load %arg4[%c1_38, %c0_39, %c0_40] : memref<9x128x128xbf16, #tpu.memory_space<vmem>>, vector<1x128x128xbf16>
    %39 = vector.shape_cast %38 : vector<1x128x128xbf16> to vector<128x128xbf16>
    %cst_41 = arith.constant dense<0.000000e+00> : vector<16x128xf32>
    %40 = tpu.matmul %37, %39, %cst_41 {dimension_numbers = #tpu.dot_dimension_numbers<[1], [0], [0], [1], [0, 0, 1, 1], [], []>} : vector<16x128xbf16>, vector<128x128xbf16>, vector<16x128xf32> -> vector<16x128xf32>
    %41 = vector.shape_cast %40 : vector<16x128xf32> to vector<1x16x128xf32>
    %42 = arith.addf %36, %41 : vector<1x16x128xf32>
    %c0_42 = arith.constant 0 : index
    %c0_43 = arith.constant 0 : index
    %c0_44 = arith.constant 0 : index
    %43 = vector.load %arg8[%c0_42, %c0_43, %c0_44] : memref<1x16x128xf32, #tpu.memory_space<vmem>>, vector<1x16x128xf32>
    tpu.vector_store %arg8[%c0_42, %c0_43, %c0_44], %42 {strides = array<i32>} : memref<1x16x128xf32, #tpu.memory_space<vmem>>, vector<1x16x128xf32>,
    %c0_45 = arith.constant 0 : index
    %c0_46 = arith.constant 0 : index
    %44 = vector.load %arg9[%c0_45, %c0_46] : memref<16x128xf32, #tpu.memory_space<vmem>>, vector<16x128xf32>
    %c3_i32 = arith.constant 3 : i32
    %45 = tpu.dynamic_rotate %44 by %c3_i32 dim 0 : vector<16x128xf32>, i32 -> vector<16x128xf32>
    %c2 = arith.constant 2 : index
    %c0_47 = arith.constant 0 : index
    %c0_48 = arith.constant 0 : index
    %46 = vector.load %arg6[%c2, %c0_47, %c0_48] : memref<9x16x1xf32, #tpu.memory_space<vmem>>, vector<1x16x1xf32>
    %47 = vector.shape_cast %46 : vector<1x16x1xf32> to vector<16x1xf32>
    %48 = vector.broadcast %47 : vector<16x1xf32> to vector<16x128xf32>
    %49 = arith.mulf %45, %48 : vector<16x128xf32>
    %c0_49 = arith.constant 0 : index
    %c0_50 = arith.constant 0 : index
    %c0_51 = arith.constant 0 : index
    %50 = vector.load %arg8[%c0_49, %c0_50, %c0_51] : memref<1x16x128xf32, #tpu.memory_space<vmem>>, vector<1x16x128xf32>
    %51 = arith.truncf %49 : vector<16x128xf32> to vector<16x128xbf16>
    %c2_52 = arith.constant 2 : index
    %c0_53 = arith.constant 0 : index
    %c0_54 = arith.constant 0 : index
    %52 = vector.load %arg4[%c2_52, %c0_53, %c0_54] : memref<9x128x128xbf16, #tpu.memory_space<vmem>>, vector<1x128x128xbf16>
    %53 = vector.shape_cast %52 : vector<1x128x128xbf16> to vector<128x128xbf16>
    %cst_55 = arith.constant dense<0.000000e+00> : vector<16x128xf32>
    %54 = tpu.matmul %51, %53, %cst_55 {dimension_numbers = #tpu.dot_dimension_numbers<[1], [0], [0], [1], [0, 0, 1, 1], [], []>} : vector<16x128xbf16>, vector<128x128xbf16>, vector<16x128xf32> -> vector<16x128xf32>
    %55 = vector.shape_cast %54 : vector<16x128xf32> to vector<1x16x128xf32>
    %56 = arith.addf %50, %55 : vector<1x16x128xf32>
    %c0_56 = arith.constant 0 : index
    %c0_57 = arith.constant 0 : index
    %c0_58 = arith.constant 0 : index
    %57 = vector.load %arg8[%c0_56, %c0_57, %c0_58] : memref<1x16x128xf32, #tpu.memory_space<vmem>>, vector<1x16x128xf32>
    tpu.vector_store %arg8[%c0_56, %c0_57, %c0_58], %56 {strides = array<i32>} : memref<1x16x128xf32, #tpu.memory_space<vmem>>, vector<1x16x128xf32>,
    %c0_59 = arith.constant 0 : index
    %c0_60 = arith.constant 0 : index
    %58 = vector.load %arg9[%c0_59, %c0_60] : memref<16x128xf32, #tpu.memory_space<vmem>>, vector<16x128xf32>
    %c1_i32 = arith.constant 1 : i32
    %59 = tpu.dynamic_rotate %58 by %c1_i32 dim 0 : vector<16x128xf32>, i32 -> vector<16x128xf32>
    %c3 = arith.constant 3 : index
    %c0_61 = arith.constant 0 : index
    %c0_62 = arith.constant 0 : index
    %60 = vector.load %arg6[%c3, %c0_61, %c0_62] : memref<9x16x1xf32, #tpu.memory_space<vmem>>, vector<1x16x1xf32>
    %61 = vector.shape_cast %60 : vector<1x16x1xf32> to vector<16x1xf32>
    %62 = vector.broadcast %61 : vector<16x1xf32> to vector<16x128xf32>
    %63 = arith.mulf %59, %62 : vector<16x128xf32>
    %c0_63 = arith.constant 0 : index
    %c0_64 = arith.constant 0 : index
    %c0_65 = arith.constant 0 : index
    %64 = vector.load %arg8[%c0_63, %c0_64, %c0_65] : memref<1x16x128xf32, #tpu.memory_space<vmem>>, vector<1x16x128xf32>
    %65 = arith.truncf %63 : vector<16x128xf32> to vector<16x128xbf16>
    %c3_66 = arith.constant 3 : index
    %c0_67 = arith.constant 0 : index
    %c0_68 = arith.constant 0 : index
    %66 = vector.load %arg4[%c3_66, %c0_67, %c0_68] : memref<9x128x128xbf16, #tpu.memory_space<vmem>>, vector<1x128x128xbf16>
    %67 = vector.shape_cast %66 : vector<1x128x128xbf16> to vector<128x128xbf16>
    %cst_69 = arith.constant dense<0.000000e+00> : vector<16x128xf32>
    %68 = tpu.matmul %65, %67, %cst_69 {dimension_numbers = #tpu.dot_dimension_numbers<[1], [0], [0], [1], [0, 0, 1, 1], [], []>} : vector<16x128xbf16>, vector<128x128xbf16>, vector<16x128xf32> -> vector<16x128xf32>
    %69 = vector.shape_cast %68 : vector<16x128xf32> to vector<1x16x128xf32>
    %70 = arith.addf %64, %69 : vector<1x16x128xf32>
    %c0_70 = arith.constant 0 : index
    %c0_71 = arith.constant 0 : index
    %c0_72 = arith.constant 0 : index
    %71 = vector.load %arg8[%c0_70, %c0_71, %c0_72] : memref<1x16x128xf32, #tpu.memory_space<vmem>>, vector<1x16x128xf32>
    tpu.vector_store %arg8[%c0_70, %c0_71, %c0_72], %70 {strides = array<i32>} : memref<1x16x128xf32, #tpu.memory_space<vmem>>, vector<1x16x128xf32>,
    %c0_73 = arith.constant 0 : index
    %c0_74 = arith.constant 0 : index
    %72 = vector.load %arg9[%c0_73, %c0_74] : memref<16x128xf32, #tpu.memory_space<vmem>>, vector<16x128xf32>
    %c0_75 = arith.constant 0 : index
    %c0_76 = arith.constant 0 : index
    %c0_77 = arith.constant 0 : index
    %73 = vector.load %arg8[%c0_75, %c0_76, %c0_77] : memref<1x16x128xf32, #tpu.memory_space<vmem>>, vector<1x16x128xf32>
    %74 = arith.truncf %72 : vector<16x128xf32> to vector<16x128xbf16>
    %c4 = arith.constant 4 : index
    %c0_78 = arith.constant 0 : index
    %c0_79 = arith.constant 0 : index
    %75 = vector.load %arg4[%c4, %c0_78, %c0_79] : memref<9x128x128xbf16, #tpu.memory_space<vmem>>, vector<1x128x128xbf16>
    %76 = vector.shape_cast %75 : vector<1x128x128xbf16> to vector<128x128xbf16>
    %cst_80 = arith.constant dense<0.000000e+00> : vector<16x128xf32>
    %77 = tpu.matmul %74, %76, %cst_80 {dimension_numbers = #tpu.dot_dimension_numbers<[1], [0], [0], [1], [0, 0, 1, 1], [], []>} : vector<16x128xbf16>, vector<128x128xbf16>, vector<16x128xf32> -> vector<16x128xf32>
    %78 = vector.shape_cast %77 : vector<16x128xf32> to vector<1x16x128xf32>
    %79 = arith.addf %73, %78 : vector<1x16x128xf32>
    %c0_81 = arith.constant 0 : index
    %c0_82 = arith.constant 0 : index
    %c0_83 = arith.constant 0 : index
    %80 = vector.load %arg8[%c0_81, %c0_82, %c0_83] : memref<1x16x128xf32, #tpu.memory_space<vmem>>, vector<1x16x128xf32>
    tpu.vector_store %arg8[%c0_81, %c0_82, %c0_83], %79 {strides = array<i32>} : memref<1x16x128xf32, #tpu.memory_space<vmem>>, vector<1x16x128xf32>,
    %c0_84 = arith.constant 0 : index
    %c0_85 = arith.constant 0 : index
    %81 = vector.load %arg9[%c0_84, %c0_85] : memref<16x128xf32, #tpu.memory_space<vmem>>, vector<16x128xf32>
    %c15_i32 = arith.constant 15 : i32
    %82 = tpu.dynamic_rotate %81 by %c15_i32 dim 0 : vector<16x128xf32>, i32 -> vector<16x128xf32>
    %c5 = arith.constant 5 : index
    %c0_86 = arith.constant 0 : index
    %c0_87 = arith.constant 0 : index
    %83 = vector.load %arg6[%c5, %c0_86, %c0_87] : memref<9x16x1xf32, #tpu.memory_space<vmem>>, vector<1x16x1xf32>
    %84 = vector.shape_cast %83 : vector<1x16x1xf32> to vector<16x1xf32>
    %85 = vector.broadcast %84 : vector<16x1xf32> to vector<16x128xf32>
    %86 = arith.mulf %82, %85 : vector<16x128xf32>
    %c0_88 = arith.constant 0 : index
    %c0_89 = arith.constant 0 : index
    %c0_90 = arith.constant 0 : index
    %87 = vector.load %arg8[%c0_88, %c0_89, %c0_90] : memref<1x16x128xf32, #tpu.memory_space<vmem>>, vector<1x16x128xf32>
    %88 = arith.truncf %86 : vector<16x128xf32> to vector<16x128xbf16>
    %c5_91 = arith.constant 5 : index
    %c0_92 = arith.constant 0 : index
    %c0_93 = arith.constant 0 : index
    %89 = vector.load %arg4[%c5_91, %c0_92, %c0_93] : memref<9x128x128xbf16, #tpu.memory_space<vmem>>, vector<1x128x128xbf16>
    %90 = vector.shape_cast %89 : vector<1x128x128xbf16> to vector<128x128xbf16>
    %cst_94 = arith.constant dense<0.000000e+00> : vector<16x128xf32>
    %91 = tpu.matmul %88, %90, %cst_94 {dimension_numbers = #tpu.dot_dimension_numbers<[1], [0], [0], [1], [0, 0, 1, 1], [], []>} : vector<16x128xbf16>, vector<128x128xbf16>, vector<16x128xf32> -> vector<16x128xf32>
    %92 = vector.shape_cast %91 : vector<16x128xf32> to vector<1x16x128xf32>
    %93 = arith.addf %87, %92 : vector<1x16x128xf32>
    %c0_95 = arith.constant 0 : index
    %c0_96 = arith.constant 0 : index
    %c0_97 = arith.constant 0 : index
    %94 = vector.load %arg8[%c0_95, %c0_96, %c0_97] : memref<1x16x128xf32, #tpu.memory_space<vmem>>, vector<1x16x128xf32>
    tpu.vector_store %arg8[%c0_95, %c0_96, %c0_97], %93 {strides = array<i32>} : memref<1x16x128xf32, #tpu.memory_space<vmem>>, vector<1x16x128xf32>,
    %c0_98 = arith.constant 0 : index
    %c0_99 = arith.constant 0 : index
    %95 = vector.load %arg9[%c0_98, %c0_99] : memref<16x128xf32, #tpu.memory_space<vmem>>, vector<16x128xf32>
    %c13_i32 = arith.constant 13 : i32
    %96 = tpu.dynamic_rotate %95 by %c13_i32 dim 0 : vector<16x128xf32>, i32 -> vector<16x128xf32>
    %c6 = arith.constant 6 : index
    %c0_100 = arith.constant 0 : index
    %c0_101 = arith.constant 0 : index
    %97 = vector.load %arg6[%c6, %c0_100, %c0_101] : memref<9x16x1xf32, #tpu.memory_space<vmem>>, vector<1x16x1xf32>
    %98 = vector.shape_cast %97 : vector<1x16x1xf32> to vector<16x1xf32>
    %99 = vector.broadcast %98 : vector<16x1xf32> to vector<16x128xf32>
    %100 = arith.mulf %96, %99 : vector<16x128xf32>
    %c0_102 = arith.constant 0 : index
    %c0_103 = arith.constant 0 : index
    %c0_104 = arith.constant 0 : index
    %101 = vector.load %arg8[%c0_102, %c0_103, %c0_104] : memref<1x16x128xf32, #tpu.memory_space<vmem>>, vector<1x16x128xf32>
    %102 = arith.truncf %100 : vector<16x128xf32> to vector<16x128xbf16>
    %c6_105 = arith.constant 6 : index
    %c0_106 = arith.constant 0 : index
    %c0_107 = arith.constant 0 : index
    %103 = vector.load %arg4[%c6_105, %c0_106, %c0_107] : memref<9x128x128xbf16, #tpu.memory_space<vmem>>, vector<1x128x128xbf16>
    %104 = vector.shape_cast %103 : vector<1x128x128xbf16> to vector<128x128xbf16>
    %cst_108 = arith.constant dense<0.000000e+00> : vector<16x128xf32>
    %105 = tpu.matmul %102, %104, %cst_108 {dimension_numbers = #tpu.dot_dimension_numbers<[1], [0], [0], [1], [0, 0, 1, 1], [], []>} : vector<16x128xbf16>, vector<128x128xbf16>, vector<16x128xf32> -> vector<16x128xf32>
    %106 = vector.shape_cast %105 : vector<16x128xf32> to vector<1x16x128xf32>
    %107 = arith.addf %101, %106 : vector<1x16x128xf32>
    %c0_109 = arith.constant 0 : index
    %c0_110 = arith.constant 0 : index
    %c0_111 = arith.constant 0 : index
    %108 = vector.load %arg8[%c0_109, %c0_110, %c0_111] : memref<1x16x128xf32, #tpu.memory_space<vmem>>, vector<1x16x128xf32>
    tpu.vector_store %arg8[%c0_109, %c0_110, %c0_111], %107 {strides = array<i32>} : memref<1x16x128xf32, #tpu.memory_space<vmem>>, vector<1x16x128xf32>,
    %c0_112 = arith.constant 0 : index
    %c0_113 = arith.constant 0 : index
    %109 = vector.load %arg9[%c0_112, %c0_113] : memref<16x128xf32, #tpu.memory_space<vmem>>, vector<16x128xf32>
    %c12_i32 = arith.constant 12 : i32
    %110 = tpu.dynamic_rotate %109 by %c12_i32 dim 0 : vector<16x128xf32>, i32 -> vector<16x128xf32>
    %c7 = arith.constant 7 : index
    %c0_114 = arith.constant 0 : index
    %c0_115 = arith.constant 0 : index
    %111 = vector.load %arg6[%c7, %c0_114, %c0_115] : memref<9x16x1xf32, #tpu.memory_space<vmem>>, vector<1x16x1xf32>
    %112 = vector.shape_cast %111 : vector<1x16x1xf32> to vector<16x1xf32>
    %113 = vector.broadcast %112 : vector<16x1xf32> to vector<16x128xf32>
    %114 = arith.mulf %110, %113 : vector<16x128xf32>
    %c0_116 = arith.constant 0 : index
    %c0_117 = arith.constant 0 : index
    %c0_118 = arith.constant 0 : index
    %115 = vector.load %arg8[%c0_116, %c0_117, %c0_118] : memref<1x16x128xf32, #tpu.memory_space<vmem>>, vector<1x16x128xf32>
    %116 = arith.truncf %114 : vector<16x128xf32> to vector<16x128xbf16>
    %c7_119 = arith.constant 7 : index
    %c0_120 = arith.constant 0 : index
    %c0_121 = arith.constant 0 : index
    %117 = vector.load %arg4[%c7_119, %c0_120, %c0_121] : memref<9x128x128xbf16, #tpu.memory_space<vmem>>, vector<1x128x128xbf16>
    %118 = vector.shape_cast %117 : vector<1x128x128xbf16> to vector<128x128xbf16>
    %cst_122 = arith.constant dense<0.000000e+00> : vector<16x128xf32>
    %119 = tpu.matmul %116, %118, %cst_122 {dimension_numbers = #tpu.dot_dimension_numbers<[1], [0], [0], [1], [0, 0, 1, 1], [], []>} : vector<16x128xbf16>, vector<128x128xbf16>, vector<16x128xf32> -> vector<16x128xf32>
    %120 = vector.shape_cast %119 : vector<16x128xf32> to vector<1x16x128xf32>
    %121 = arith.addf %115, %120 : vector<1x16x128xf32>
    %c0_123 = arith.constant 0 : index
    %c0_124 = arith.constant 0 : index
    %c0_125 = arith.constant 0 : index
    %122 = vector.load %arg8[%c0_123, %c0_124, %c0_125] : memref<1x16x128xf32, #tpu.memory_space<vmem>>, vector<1x16x128xf32>
    tpu.vector_store %arg8[%c0_123, %c0_124, %c0_125], %121 {strides = array<i32>} : memref<1x16x128xf32, #tpu.memory_space<vmem>>, vector<1x16x128xf32>,
    %c0_126 = arith.constant 0 : index
    %c0_127 = arith.constant 0 : index
    %123 = vector.load %arg9[%c0_126, %c0_127] : memref<16x128xf32, #tpu.memory_space<vmem>>, vector<16x128xf32>
    %c11_i32 = arith.constant 11 : i32
    %124 = tpu.dynamic_rotate %123 by %c11_i32 dim 0 : vector<16x128xf32>, i32 -> vector<16x128xf32>
    %c8 = arith.constant 8 : index
    %c0_128 = arith.constant 0 : index
    %c0_129 = arith.constant 0 : index
    %125 = vector.load %arg6[%c8, %c0_128, %c0_129] : memref<9x16x1xf32, #tpu.memory_space<vmem>>, vector<1x16x1xf32>
    %126 = vector.shape_cast %125 : vector<1x16x1xf32> to vector<16x1xf32>
    %127 = vector.broadcast %126 : vector<16x1xf32> to vector<16x128xf32>
    %128 = arith.mulf %124, %127 : vector<16x128xf32>
    %c0_130 = arith.constant 0 : index
    %c0_131 = arith.constant 0 : index
    %c0_132 = arith.constant 0 : index
    %129 = vector.load %arg8[%c0_130, %c0_131, %c0_132] : memref<1x16x128xf32, #tpu.memory_space<vmem>>, vector<1x16x128xf32>
    %130 = arith.truncf %128 : vector<16x128xf32> to vector<16x128xbf16>
    %c8_133 = arith.constant 8 : index
    %c0_134 = arith.constant 0 : index
    %c0_135 = arith.constant 0 : index
    %131 = vector.load %arg4[%c8_133, %c0_134, %c0_135] : memref<9x128x128xbf16, #tpu.memory_space<vmem>>, vector<1x128x128xbf16>
    %132 = vector.shape_cast %131 : vector<1x128x128xbf16> to vector<128x128xbf16>
    %cst_136 = arith.constant dense<0.000000e+00> : vector<16x128xf32>
    %133 = tpu.matmul %130, %132, %cst_136 {dimension_numbers = #tpu.dot_dimension_numbers<[1], [0], [0], [1], [0, 0, 1, 1], [], []>} : vector<16x128xbf16>, vector<128x128xbf16>, vector<16x128xf32> -> vector<16x128xf32>
    %134 = vector.shape_cast %133 : vector<16x128xf32> to vector<1x16x128xf32>
    %135 = arith.addf %129, %134 : vector<1x16x128xf32>
    %c0_137 = arith.constant 0 : index
    %c0_138 = arith.constant 0 : index
    %c0_139 = arith.constant 0 : index
    %136 = vector.load %arg8[%c0_137, %c0_138, %c0_139] : memref<1x16x128xf32, #tpu.memory_space<vmem>>, vector<1x16x128xf32>
    tpu.vector_store %arg8[%c0_137, %c0_138, %c0_139], %135 {strides = array<i32>} : memref<1x16x128xf32, #tpu.memory_space<vmem>>, vector<1x16x128xf32>,
    return
  }
  func.func @transform_0(%arg0: i32) -> (i32, i32, i32) {
    %c0_i32 = arith.constant 0 : i32
    %c0_i32_0 = arith.constant 0 : i32
    %c0_i32_1 = arith.constant 0 : i32
    return %arg0, %c0_i32, %c0_i32_0 : i32, i32, i32
  }
  func.func @transform_1(%arg0: i32) -> (i32, i32) {
    %c0_i32 = arith.constant 0 : i32
    %c0_i32_0 = arith.constant 0 : i32
    %c0_i32_1 = arith.constant 0 : i32
    return %c0_i32, %c0_i32_0 : i32, i32
  }
  func.func @transform_2(%arg0: i32) -> (i32, i32) {
    %c0_i32 = arith.constant 0 : i32
    %c0_i32_0 = arith.constant 0 : i32
    %c0_i32_1 = arith.constant 0 : i32
    return %c0_i32, %c0_i32_0 : i32, i32
  }
  func.func @transform_3(%arg0: i32) -> (i32, i32, i32) {
    %c0_i32 = arith.constant 0 : i32
    %c0_i32_0 = arith.constant 0 : i32
    %c0_i32_1 = arith.constant 0 : i32
    %c0_i32_2 = arith.constant 0 : i32
    return %c0_i32, %c0_i32_0, %c0_i32_1 : i32, i32, i32
  }
  func.func @transform_4(%arg0: i32) -> (i32, i32) {
    %c0_i32 = arith.constant 0 : i32
    %c0_i32_0 = arith.constant 0 : i32
    %c0_i32_1 = arith.constant 0 : i32
    return %c0_i32, %c0_i32_0 : i32, i32
  }
  func.func @transform_5(%arg0: i32) -> (i32, i32, i32) {
    %c0_i32 = arith.constant 0 : i32
    %c0_i32_0 = arith.constant 0 : i32
    %c0_i32_1 = arith.constant 0 : i32
    %c0_i32_2 = arith.constant 0 : i32
    return %c0_i32, %c0_i32_0, %c0_i32_1 : i32, i32, i32
  }
  func.func @transform_6(%arg0: i32) -> (i32, i32, i32) {
    %c0_i32 = arith.constant 0 : i32
    %c0_i32_0 = arith.constant 0 : i32
    %c0_i32_1 = arith.constant 0 : i32
    return %arg0, %c0_i32, %c0_i32_0 : i32, i32, i32
  }
  func.func @transform_7(%arg0: i32) -> (i32, i32, i32) {
    %c0_i32 = arith.constant 0 : i32
    %c0_i32_0 = arith.constant 0 : i32
    %c0_i32_1 = arith.constant 0 : i32
    return %arg0, %c0_i32, %c0_i32_0 : i32, i32, i32
  }
}

</mosaic_0001>

<llo_original>
// kernel: tpu_custom_call.1
$region0: #{tpu_custom_call.1}
  #allocation0 [shape = 'u32[]', space=smem, size = 0x4, offset = 0x4, fixed_abs, tag = 'smem constant byte address 0x4 - core index']
  #allocation1 [shape = 'u32[144,128]{1,0:T(1,128)}', space=vmem, size = 0x12000, scoped, tag = 'internal scratch']
  #allocation2 [shape = 'f32[16,128]{1,0:T(8,128)}', space=vmem, size = 0x2000, scoped, tag = 'scratch operand']
  %s0 = inlined_call_operand.vmem [shape: bf16[2,16,128], index: 0, kind: input, shape index: {}]
  %s1 = inlined_call_operand.vmem [shape: bf16[128,128], index: 1, kind: input, shape index: {}]
  %s2 = inlined_call_operand.vmem [shape: f32[1,128], index: 2, kind: input, shape index: {}]
  %s3 = inlined_call_operand.hbm [shape: bf16[9,128,128], index: 3, kind: input, shape index: {}]
  %s4 = inlined_call_operand.vmem [shape: f32[1,128], index: 4, kind: input, shape index: {}]
  %s5 = inlined_call_operand.vmem [shape: f32[9,16,1], index: 5, kind: input, shape index: {}]
  %s6 = inlined_call_operand.hbm [shape: bf16[2,16,128], index: 6, kind: output, shape index: {0}]
  %s7 = inlined_call_operand.hbm [shape: f32[2,16,128], index: 7, kind: output, shape index: {1}]
  %8 = xla_tuple %s6, %s7
  %s9 = sld [smem:[#allocation0]]
  $region69: #{tpu_custom_call.1} parent=0
    _
  %s11 = ssub.s32 1, %s9
  %s12 = scalar_select 0, %s11, %s9
  $region1: #{tpu_custom_call.1} parent=0
    #allocation3 [shape = 'u8[294912]{0}', space=vmem, size = 0x48000, scoped, tag = 'input window, operand 3, single buffered']
    #allocation4 [shape = 's32[2]{0}', space=sflag, size = 0x8, scoped, tag = 'scoped memory for tpu_custom_call.1']
    #allocation5 [shape = 's32[2]{0}', space=sflag, size = 0x8, scoped, tag = 'scoped memory for tpu_custom_call.1']
    #allocation6 [shape = 'u8[8192]{0}', space=vmem, size = 0x2000, scoped, tag = 'output window, operand 0']
    #allocation7 [shape = 'u8[16384]{0}', space=vmem, size = 0x4000, scoped, tag = 'output window, operand 1']
    #allocation8 [shape = 's32[2]{0}', space=sflag, size = 0x8, scoped, tag = 'scoped memory for tpu_custom_call.1']
    %13 = vsyncpa [#allocation4], 0
    %14 = vsyncpa [#allocation5], 0
    %s15 = scalar_lea.sflag [#allocation5], 1
    %16 = vsyncpa %s15, 0
    %17 = vsyncpa [#allocation8], 0
    %s18 = scalar_lea.sflag [#allocation8], 1
    %19 = vsyncpa %s18, 0
    loop: start=0, step=1, limit=4
    $region2: #{tpu_custom_call.1} parent=1 // loop_pre_header
      _
    $region3: #{tpu_custom_call.1} parent=1 // loop_header
      %s21 = sphi 0, %s25
      %p22 = scmp.ge.s32.totalorder %s21, 4
      %s31 = sphi 0, %s33
      %s34 = sphi 0, %s31
      %s35 = sphi 0, %s34
      %s51 = sphi 0, %s35
      %s55 = sphi 0, %s55
      %s57 = sphi 0, %s55
      %s58 = sphi 0, %s57
      %s72 = sphi 0, %s58
      %s76 = sphi 0, %s76
      %s78 = sphi 0, %s76
      %s79 = sphi 0, %s78
      %s93 = sphi 0, %s79
      %s97 = sphi 0, %s97
      %s99 = sphi 0, %s97
      %s100 = sphi 0, %s99
      %s114 = sphi 0, %s100
      %s118 = sphi 0, %s118
      %s120 = sphi 0, %s118
      %s121 = sphi 0, %s120
      %s135 = sphi 0, %s121
      %s139 = sphi 0, %s139
      %s141 = sphi 0, %s139
      %s142 = sphi 0, %s141
      %s156 = sphi 0, %s142
      %s162 = sphi 0, %s164
      %s165 = sphi 0, %s162
      %s166 = sphi 0, %s165
      %s182 = sphi 0, %s166
      %s188 = sphi 0, %s190
      %s191 = sphi 0, %s188
      %s192 = sphi 0, %s191
      %s208 = sphi 0, %s192
    $region4: #{tpu_custom_call.1} parent=1 // loop_header_branch
      %24 = sbr.rel (%p22) target = $region8
    $region5: #{tpu_custom_call.1} parent=1 // loop_body
      %s26 = ssub.s32 %s21, 1
      %s27 = ssub.s32 %s21, 2
      %s28 = sadd.s32 %s21, 1
      %s29 = ssub.s32 %s21, %s28
      %p30 = scmp.eq.s32.totalorder %s29, 0
      %s32 = sadd.s32 %s31, 1
      %s33 = scalar_select %p30, %s31, %s32
      %p36 = pneg %p30
      %p37 = scmp.eq.s32.totalorder %s21, 1
      %p38 = por %p36, %p37
      %p39 = scmp.ne.s32.totalorder %s31, %s34
      %p40 = scmp.eq.s32.totalorder %s21, 0
      %p41 = por %p39, %p40
      %p42 = scmp.ne.s32.totalorder %s31, %s34
      %p43 = scmp.eq.s32.totalorder %s26, 1
      %p44 = por %p42, %p43
      %p45 = scmp.ne.s32.totalorder %s34, %s35
      %p46 = scmp.eq.s32.totalorder %s26, 0
      %p47 = por %p45, %p46
      %p48 = scmp.ne.s32.totalorder %s34, %s35
      %p49 = scmp.eq.s32.totalorder %s27, 1
      %p50 = por %p48, %p49
      %p52 = scmp.ne.s32.totalorder %s35, %s51
      %p53 = scmp.eq.s32.totalorder %s27, 0
      %p54 = por %p52, %p53
      %s56 = sadd.s32 %s55, 1
      %p59 = scmp.eq.s32.totalorder %s21, 1
      %p60 = scmp.ne.s32.totalorder %s55, %s57
      %p61 = scmp.eq.s32.totalorder %s21, 0
      %p62 = por %p60, %p61
      %p63 = scmp.ne.s32.totalorder %s55, %s57
      %p64 = scmp.eq.s32.totalorder %s26, 1
      %p65 = por %p63, %p64
      %p66 = scmp.ne.s32.totalorder %s57, %s58
      %p67 = scmp.eq.s32.totalorder %s26, 0
      %p68 = por %p66, %p67
      %p69 = scmp.ne.s32.totalorder %s57, %s58
      %p70 = scmp.eq.s32.totalorder %s27, 1
      %p71 = por %p69, %p70
      %p73 = scmp.ne.s32.totalorder %s58, %s72
      %p74 = scmp.eq.s32.totalorder %s27, 0
      %p75 = por %p73, %p74
      %s77 = sadd.s32 %s76, 1
      %p80 = scmp.eq.s32.totalorder %s21, 1
      %p81 = scmp.ne.s32.totalorder %s76, %s78
      %p82 = scmp.eq.s32.totalorder %s21, 0
      %p83 = por %p81, %p82
      %p84 = scmp.ne.s32.totalorder %s76, %s78
      %p85 = scmp.eq.s32.totalorder %s26, 1
      %p86 = por %p84, %p85
      %p87 = scmp.ne.s32.totalorder %s78, %s79
      %p88 = scmp.eq.s32.totalorder %s26, 0
      %p89 = por %p87, %p88
      %p90 = scmp.ne.s32.totalorder %s78, %s79
      %p91 = scmp.eq.s32.totalorder %s27, 1
      %p92 = por %p90, %p91
      %p94 = scmp.ne.s32.totalorder %s79, %s93
      %p95 = scmp.eq.s32.totalorder %s27, 0
      %p96 = por %p94, %p95
      %s98 = sadd.s32 %s97, 1
      %p101 = scmp.eq.s32.totalorder %s21, 1
      %p102 = scmp.ne.s32.totalorder %s97, %s99
      %p103 = scmp.eq.s32.totalorder %s21, 0
      %p104 = por %p102, %p103
      %p105 = scmp.ne.s32.totalorder %s97, %s99
      %p106 = scmp.eq.s32.totalorder %s26, 1
      %p107 = por %p105, %p106
      %p108 = scmp.ne.s32.totalorder %s99, %s100
      %p109 = scmp.eq.s32.totalorder %s26, 0
      %p110 = por %p108, %p109
      %p111 = scmp.ne.s32.totalorder %s99, %s100
      %p112 = scmp.eq.s32.totalorder %s27, 1
      %p113 = por %p111, %p112
      %p115 = scmp.ne.s32.totalorder %s100, %s114
      %p116 = scmp.eq.s32.totalorder %s27, 0
      %p117 = por %p115, %p116
      %s119 = sadd.s32 %s118, 1
      %p122 = scmp.eq.s32.totalorder %s21, 1
      %p123 = scmp.ne.s32.totalorder %s118, %s120
      %p124 = scmp.eq.s32.totalorder %s21, 0
      %p125 = por %p123, %p124
      %p126 = scmp.ne.s32.totalorder %s118, %s120
      %p127 = scmp.eq.s32.totalorder %s26, 1
      %p128 = por %p126, %p127
      %p129 = scmp.ne.s32.totalorder %s120, %s121
      %p130 = scmp.eq.s32.totalorder %s26, 0
      %p131 = por %p129, %p130
      %p132 = scmp.ne.s32.totalorder %s120, %s121
      %p133 = scmp.eq.s32.totalorder %s27, 1
      %p134 = por %p132, %p133
      %p136 = scmp.ne.s32.totalorder %s121, %s135
      %p137 = scmp.eq.s32.totalorder %s27, 0
      %p138 = por %p136, %p137
      %s140 = sadd.s32 %s139, 1
      %p143 = scmp.eq.s32.totalorder %s21, 1
      %p144 = scmp.ne.s32.totalorder %s139, %s141
      %p145 = scmp.eq.s32.totalorder %s21, 0
      %p146 = por %p144, %p145
      %p147 = scmp.ne.s32.totalorder %s139, %s141
      %p148 = scmp.eq.s32.totalorder %s26, 1
      %p149 = por %p147, %p148
      %p150 = scmp.ne.s32.totalorder %s141, %s142
      %p151 = scmp.eq.s32.totalorder %s26, 0
      %p152 = por %p150, %p151
      %p153 = scmp.ne.s32.totalorder %s141, %s142
      %p154 = scmp.eq.s32.totalorder %s27, 1
      %p155 = por %p153, %p154
      %p157 = scmp.ne.s32.totalorder %s142, %s156
      %p158 = scmp.eq.s32.totalorder %s27, 0
      %p159 = por %p157, %p158
      %s160 = ssub.s32 %s21, %s28
      %p161 = scmp.eq.s32.totalorder %s160, 0
      %s163 = sadd.s32 %s162, 1
      %s164 = scalar_select %p161, %s162, %s163
      %p167 = pneg %p161
      %p168 = scmp.eq.s32.totalorder %s21, 1
      %p169 = por %p167, %p168
      %p170 = scmp.ne.s32.totalorder %s162, %s165
      %p171 = scmp.eq.s32.totalorder %s21, 0
      %p172 = por %p170, %p171
      %p173 = scmp.ne.s32.totalorder %s162, %s165
      %p174 = scmp.eq.s32.totalorder %s26, 1
      %p175 = por %p173, %p174
      %p176 = scmp.ne.s32.totalorder %s165, %s166
      %p177 = scmp.eq.s32.totalorder %s26, 0
      %p178 = por %p176, %p177
      %p179 = scmp.ne.s32.totalorder %s165, %s166
      %p180 = scmp.eq.s32.totalorder %s27, 1
      %p181 = por %p179, %p180
      %p183 = scmp.ne.s32.totalorder %s166, %s182
      %p184 = scmp.eq.s32.totalorder %s27, 0
      %p185 = por %p183, %p184
      %s186 = ssub.s32 %s21, %s28
      %p187 = scmp.eq.s32.totalorder %s186, 0
      %s189 = sadd.s32 %s188, 1
      %s190 = scalar_select %p187, %s188, %s189
      %p193 = pneg %p187
      %p194 = scmp.eq.s32.totalorder %s21, 1
      %p195 = por %p193, %p194
      %p196 = scmp.ne.s32.totalorder %s188, %s191
      %p197 = scmp.eq.s32.totalorder %s21, 0
      %p198 = por %p196, %p197
      %p199 = scmp.ne.s32.totalorder %s188, %s191
      %p200 = scmp.eq.s32.totalorder %s26, 1
      %p201 = por %p199, %p200
      %p202 = scmp.ne.s32.totalorder %s191, %s192
      %p203 = scmp.eq.s32.totalorder %s26, 0
      %p204 = por %p202, %p203
      %p205 = scmp.ne.s32.totalorder %s191, %s192
      %p206 = scmp.eq.s32.totalorder %s27, 1
      %p207 = por %p205, %p206
      %p209 = scmp.ne.s32.totalorder %s192, %s208
      %p210 = scmp.eq.s32.totalorder %s27, 0
      %p211 = por %p209, %p210
      %p212 = scmp.le.s32.totalorder 1, %s21
      %p213 = scmp.lt.s32.totalorder %s21, 3
      %p214 = pnand %p212, %p213
      %p215 = pneg %p214
      // Predicated region
      $region9: #{tpu_custom_call.1} parent=5 // pred_check
        _
      $region10: #{tpu_custom_call.1} parent=5 // pred_check_branch
        %217 = sbr.rel (%p214) target = $region12
      $region11: #{tpu_custom_call.1} parent=5 // pred_region
        %s218 = ssub.s32 %s21, 1
        // Predicated region
        $region13: #{tpu_custom_call.1} parent=11 // pred_check
          %p219 = pneg %p68
        $region14: #{tpu_custom_call.1} parent=11 // pred_check_branch
          %221 = sbr.rel (%p219) target = $region16
        $region15: #{tpu_custom_call.1} parent=11 // pred_region
          _
        $region16: #{tpu_custom_call.1} parent=11 // pred_fallthru
          _
        // Predicated region
        $region17: #{tpu_custom_call.1} parent=11 // pred_check
          %p222 = pneg %p89
        $region18: #{tpu_custom_call.1} parent=11 // pred_check_branch
          %224 = sbr.rel (%p222) target = $region20
        $region19: #{tpu_custom_call.1} parent=11 // pred_region
          _
        $region20: #{tpu_custom_call.1} parent=11 // pred_fallthru
          _
        // Predicated region
        $region21: #{tpu_custom_call.1} parent=11 // pred_check
          %p225 = pneg %p110
        $region22: #{tpu_custom_call.1} parent=11 // pred_check_branch
          %227 = sbr.rel (%p225) target = $region24
        $region23: #{tpu_custom_call.1} parent=11 // pred_region
          %s229 = ssub.s32 9216, 9216
          %230 = vsyncadd [#allocation4], %s229
          %s231 = sshll.u32 [#allocation3], 4
          %s232 = int_to_ptr.vmem [resolvable:$true] %s231
          %237 = dma.hbm_to_vmem [thread:$0]  %s3, 9216, %s232, [#allocation4], 64, 64, 4
        $region24: #{tpu_custom_call.1} parent=11 // pred_fallthru
          _
        // Predicated region
        $region25: #{tpu_custom_call.1} parent=11 // pred_check
          %p238 = pneg %p131
        $region26: #{tpu_custom_call.1} parent=11 // pred_check_branch
          %240 = sbr.rel (%p238) target = $region28
        $region27: #{tpu_custom_call.1} parent=11 // pred_region
          _
        $region28: #{tpu_custom_call.1} parent=11 // pred_fallthru
          _
        // Predicated region
        $region29: #{tpu_custom_call.1} parent=11 // pred_check
          %p241 = pneg %p152
        $region30: #{tpu_custom_call.1} parent=11 // pred_check_branch
          %243 = sbr.rel (%p241) target = $region32
        $region31: #{tpu_custom_call.1} parent=11 // pred_region
          _
        $region32: #{tpu_custom_call.1} parent=11 // pred_fallthru
          _
      $region12: #{tpu_custom_call.1} parent=5 // pred_fallthru
        _
      %p244 = scmp.lt.s32.totalorder %s21, 2
      // Predicated region
      $region33: #{tpu_custom_call.1} parent=5 // pred_check
        %p245 = pneg %p244
      $region34: #{tpu_custom_call.1} parent=5 // pred_check_branch
        %247 = sbr.rel (%p245) target = $region36
      $region35: #{tpu_custom_call.1} parent=5 // pred_region
        // Predicated region
        $region37: #{tpu_custom_call.1} parent=35 // pred_check
          %p248 = pneg %p41
        $region38: #{tpu_custom_call.1} parent=35 // pred_check_branch
          %250 = sbr.rel (%p248) target = $region40
        $region39: #{tpu_custom_call.1} parent=35 // pred_region
          %p251 = scmp.lt.s32.totalorder %s21, 1
          %s252 = scalar_select %p251, %s21, 1
          %s253 = smul.addr %s252, 2
          %s254 = smul.addr %s253, 4
          %s255 = scalar_lea.vmem %s0, %s254
        $region40: #{tpu_custom_call.1} parent=35 // pred_fallthru
          _
      $region36: #{tpu_custom_call.1} parent=5 // pred_fallthru
        _
      %p256 = scmp.le.s32.totalorder 1, %s21
      %p257 = scmp.lt.s32.totalorder %s21, 3
      %p258 = pnand %p256, %p257
      %p259 = pneg %p258
      // Predicated region
      $region41: #{tpu_custom_call.1} parent=5 // pred_check
        _
      $region42: #{tpu_custom_call.1} parent=5 // pred_check_branch
        %261 = sbr.rel (%p258) target = $region44
      $region43: #{tpu_custom_call.1} parent=5 // pred_region
        %s262 = ssub.s32 %s21, 1
        // Predicated region
        $region45: #{tpu_custom_call.1} parent=43 // pred_check
          %p263 = pneg %p110
        $region46: #{tpu_custom_call.1} parent=43 // pred_check_branch
          %265 = sbr.rel (%p263) target = $region48
        $region47: #{tpu_custom_call.1} parent=43 // pred_region
          %266 = dma.done [#allocation4], 9216
        $region48: #{tpu_custom_call.1} parent=43 // pred_fallthru
          _
        %p267 = scmp.lt.s32.totalorder %s26, 1
        %s268 = scalar_select %p267, %s26, 1
        %s269 = smul.addr %s268, 2
        %s270 = smul.addr %s269, 4
        %s271 = scalar_lea.vmem %s0, %s270
        %p272 = pneg %p47
        %p273 = pneg %p44
        %p274 = pneg %p68
        %p275 = pneg %p65
        %p276 = pneg %p89
        %p277 = pneg %p86
        %p278 = pneg %p110
        %p279 = pneg %p107
        %p280 = pneg %p131
        %p281 = pneg %p128
        %p282 = pneg %p152
        %p283 = pneg %p149
        %p284 = pneg %p178
        %p285 = pneg %p175
        %s286 = sand.u32 %s165, 1
        %s287 = scalar_lea.sflag [#allocation5], %s286
        %s288 = sand.u32 %s165, 1
        %s289 = smul.addr %s288, 8
        %s290 = scalar_lea.vmem [#allocation6], %s289
        %p291 = pneg %p204
        %p292 = pneg %p201
        %s293 = sand.u32 %s191, 1
        %s294 = scalar_lea.sflag [#allocation8], %s293
        %s295 = sand.u32 %s191, 1
        %s296 = smul.addr %s295, 16
        %s297 = scalar_lea.vmem [#allocation7], %s296
        %p298 = scmp.lt.s32.totalorder %s26, 1
        %s299 = scalar_select %p298, %s26, 1
        %s300 = smul.addr %s299, 2
        %s301 = smul.addr %s300, 4
        %s302 = scalar_lea.vmem %s0, %s301
        %v304 = vld [vmem:[%s302] sm:$0xf]
        %v305 = vld [vmem:[%s302 + $0x4] sm:$0xf]
        %v306 = vld [vmem:[%s1] sm:$0xf]
        %v307 = vld [vmem:[%s1 + $0x4] sm:$0xf]
        %v308 = vld [vmem:[%s1 + $0x8] sm:$0xf]
        %v309 = vld [vmem:[%s1 + $0xc] sm:$0xf]
        %v310 = vld [vmem:[%s1 + $0x10] sm:$0xf]
        %v311 = vld [vmem:[%s1 + $0x14] sm:$0xf]
        %v312 = vld [vmem:[%s1 + $0x18] sm:$0xf]
        %v313 = vld [vmem:[%s1 + $0x1c] sm:$0xf]
        %v314 = vld [vmem:[%s1 + $0x20] sm:$0xf]
        %v315 = vld [vmem:[%s1 + $0x24] sm:$0xf]
        %v316 = vld [vmem:[%s1 + $0x28] sm:$0xf]
        %v317 = vld [vmem:[%s1 + $0x2c] sm:$0xf]
        %v318 = vld [vmem:[%s1 + $0x30] sm:$0xf]
        %v319 = vld [vmem:[%s1 + $0x34] sm:$0xf]
        %v320 = vld [vmem:[%s1 + $0x38] sm:$0xf]
        %v321 = vld [vmem:[%s1 + $0x3c] sm:$0xf]
        %v322 = vld [vmem:[%s2] sm:$0x1]
        %v324 = vlaneseq
        %v325 = vshrl.u32 %v324, 7
        %v326 = vsub.s32 0, %v325
        %v327 = vrot.slane %v322, %v326
        %v331 = vunpack.c.l.b16 %v304
        %v332 = vunpack.c.l.b16 %v305
        %v333 = vpack.c.b16 %v332, %v331
        %v351 = vunpack.c.l.b16 %v306
        %v352 = vunpack.c.l.b16 %v307
        %v353 = vunpack.c.l.b16 %v308
        %v354 = vunpack.c.l.b16 %v309
        %v355 = vunpack.c.l.b16 %v310
        %v356 = vunpack.c.l.b16 %v311
        %v357 = vunpack.c.l.b16 %v312
        %v358 = vunpack.c.l.b16 %v313
        %v359 = vunpack.c.l.b16 %v314
        %v360 = vunpack.c.l.b16 %v315
        %v361 = vunpack.c.l.b16 %v316
        %v362 = vunpack.c.l.b16 %v317
        %v363 = vunpack.c.l.b16 %v318
        %v364 = vunpack.c.l.b16 %v319
        %v365 = vunpack.c.l.b16 %v320
        %v366 = vunpack.c.l.b16 %v321
        %v367 = vpack.c.b16 %v352, %v351
        %v368 = vpack.c.b16 %v354, %v353
        %v369 = vpack.c.b16 %v356, %v355
        %v370 = vpack.c.b16 %v358, %v357
        %v371 = vpack.c.b16 %v360, %v359
        %v372 = vpack.c.b16 %v362, %v361
        %v373 = vpack.c.b16 %v364, %v363
        %v374 = vpack.c.b16 %v366, %v365
        %383 = vmatprep.subr.bf16.mxu0 0
        %384 = vmatpush1.bf16.msra.mxu0 %v367
        %385 = vmatprep.subr.bf16.mxu0 0
        %386 = vmatpush1.bf16.msra.mxu0 %v368
        %387 = vmatprep.subr.bf16.mxu0 0
        %388 = vmatpush1.bf16.msra.mxu0 %v369
        %389 = vmatprep.subr.bf16.mxu0 0
        %390 = vmatpush1.bf16.msra.mxu0 %v370
        %391 = vmatprep.subr.bf16.mxu0 0
        %392 = vmatpush1.bf16.msra.mxu0 %v371
        %393 = vmatprep.subr.bf16.mxu0 0
        %394 = vmatpush1.bf16.msra.mxu0 %v372
        %395 = vmatprep.subr.bf16.mxu0 0
        %396 = vmatpush1.bf16.msra.mxu0 %v373
        %397 = vmatprep.subr.bf16.mxu0 0
        %398 = vmatpush1.bf16.msra.mxu0 %v374
        %399 = vmatprep.subr.bf16.mxu0 0
        %400 = vmatpush1.bf16.msra.mxu0 0
        %401 = vmatprep.subr.bf16.mxu0 0
        %402 = vmatpush1.bf16.msra.mxu0 0
        %403 = vmatprep.subr.bf16.mxu0 0
        %404 = vmatpush1.bf16.msra.mxu0 0
        %405 = vmatprep.subr.bf16.mxu0 0
        %406 = vmatpush1.bf16.msra.mxu0 0
        %407 = vmatprep.subr.bf16.mxu0 0
        %408 = vmatpush1.bf16.msra.mxu0 0
        %409 = vmatprep.subr.bf16.mxu0 0
        %410 = vmatpush1.bf16.msra.mxu0 0
        %411 = vmatprep.subr.bf16.mxu0 0
        %412 = vmatpush1.bf16.msra.mxu0 0
        %413 = vmatprep.subr.bf16.mxu0 0
        %414 = vmatpush1.bf16.msra.mxu0 0
        %415 = vmatprep.mubr.bf16.mxu0 0
        %416 = vmatmul.mubr.bf16.gmra.mrb[0].mxu0 %v333
        %v417 = vpop.f32.mrb[0].mxu0
        %v418 = vadd.f32 %v327, %v417
        %v419 = vpop.f32.mrb[0].mxu0
        %v420 = vpop.f32.mrb[0].mxu0
        %v421 = vadd.f32 %v327, %v420
        %v422 = vpop.f32.mrb[0].mxu0
        %423 = vdwg.mxu0
        %424 = vst [vmem:[#allocation2] sm:$0xff] %v418
        %425 = vst [vmem:[#allocation2 + $0x8] sm:$0xff] %v421
        %v426 = vpack.c.bf16 %v421, %v418
        %v428 = vunpack.c.l.b16 %v426
        %v429 = vunpack.c.h.b16 %v426
        %v430 = vpack.c.b16 %v428, %v428
        %v431 = vpack.c.b16 %v429, %v429
        %434 = vst [vmem:[%s290] sm:$0xf] %v430
        %435 = vst [vmem:[%s290 + $0x4] sm:$0xf] %v431
        %v436 = vld [vmem:[%s4] sm:$0x1]
        %v438 = vlaneseq
        %v439 = vshrl.u32 %v438, 7
        %v440 = vsub.s32 0, %v439
        %v441 = vrot.slane %v436, %v440
        %443 = vst [vmem:[%s297] sm:$0xff] %v441
        %444 = vst [vmem:[%s297 + $0x8] sm:$0xff] %v441
        %v445 = vld [vmem:[#allocation2] sm:$0xff]
        %v446 = vld [vmem:[#allocation2 + $0x8] sm:$0xff]
        %v447 = vrot.slane %v445, 3
        %v448 = vrot.slane %v446, 3
        %v449 = vlaneseq
        %v450 = vshrl.u32 %v449, 7
        %vm451 = vcmp.lt.s32.totalorder %v450, 5
        %v452 = vsel %vm451, %v447, %v448
        %v453 = vsel %vm451, %v448, %v447
        %v454 = vld [vmem:[%s5] sm:$0xff]
        %v455 = vld [vmem:[%s5 + $0x8] sm:$0xff]
        %457 = vset.pattern.permute.xlu0 0
        %458 = vperm.xlu0 %457, %v454
        %v459 = vpop.permute.xlu0 %458
        %462 = vset.pattern.permute.xlu0 0
        %463 = vperm.xlu0 %462, %v455
        %v464 = vpop.permute.xlu0 %463
        %v466 = vmul.f32 %v453, %v459
        %v467 = vmul.f32 %v452, %v464
        %v468 = vld [vmem:[%s297] sm:$0xff]
        %v469 = vld [vmem:[%s297 + $0x8] sm:$0xff]
        %v470 = vpack.c.bf16 %v467, %v466
        %v471 = vld [vmem:[#allocation3] sm:$0xf]
        %v472 = vld [vmem:[#allocation3 + $0x4] sm:$0xf]
        %v473 = vld [vmem:[#allocation3 + $0x8] sm:$0xf]
        %v474 = vld [vmem:[#allocation3 + $0xc] sm:$0xf]
        %v475 = vld [vmem:[#allocation3 + $0x10] sm:$0xf]
        %v476 = vld [vmem:[#allocation3 + $0x14] sm:$0xf]
        %v477 = vld [vmem:[#allocation3 + $0x18] sm:$0xf]
        %v478 = vld [vmem:[#allocation3 + $0x1c] sm:$0xf]
        %v479 = vld [vmem:[#allocation3 + $0x20] sm:$0xf]
        %v480 = vld [vmem:[#allocation3 + $0x24] sm:$0xf]
        %v481 = vld [vmem:[#allocation3 + $0x28] sm:$0xf]
        %v482 = vld [vmem:[#allocation3 + $0x2c] sm:$0xf]
        %v483 = vld [vmem:[#allocation3 + $0x30] sm:$0xf]
        %v484 = vld [vmem:[#allocation3 + $0x34] sm:$0xf]
        %v485 = vld [vmem:[#allocation3 + $0x38] sm:$0xf]
        %v486 = vld [vmem:[#allocation3 + $0x3c] sm:$0xf]
        %v503 = vunpack.c.l.b16 %v471
        %v504 = vunpack.c.l.b16 %v472
        %v505 = vunpack.c.l.b16 %v473
        %v506 = vunpack.c.l.b16 %v474
        %v507 = vunpack.c.l.b16 %v475
        %v508 = vunpack.c.l.b16 %v476
        %v509 = vunpack.c.l.b16 %v477
        %v510 = vunpack.c.l.b16 %v478
        %v511 = vunpack.c.l.b16 %v479
        %v512 = vunpack.c.l.b16 %v480
        %v513 = vunpack.c.l.b16 %v481
        %v514 = vunpack.c.l.b16 %v482
        %v515 = vunpack.c.l.b16 %v483
        %v516 = vunpack.c.l.b16 %v484
        %v517 = vunpack.c.l.b16 %v485
        %v518 = vunpack.c.l.b16 %v486
        %v519 = vpack.c.b16 %v504, %v503
        %v520 = vpack.c.b16 %v506, %v505
        %v521 = vpack.c.b16 %v508, %v507
        %v522 = vpack.c.b16 %v510, %v509
        %v523 = vpack.c.b16 %v512, %v511
        %v524 = vpack.c.b16 %v514, %v513
        %v525 = vpack.c.b16 %v516, %v515
        %v526 = vpack.c.b16 %v518, %v517
        %535 = vmatprep.subr.bf16.mxu0 0
        %536 = vmatpush1.bf16.msra.mxu0 %v519
        %537 = vmatprep.subr.bf16.mxu0 0
        %538 = vmatpush1.bf16.msra.mxu0 %v520
        %539 = vmatprep.subr.bf16.mxu0 0
        %540 = vmatpush1.bf16.msra.mxu0 %v521
        %541 = vmatprep.subr.bf16.mxu0 0
        %542 = vmatpush1.bf16.msra.mxu0 %v522
        %543 = vmatprep.subr.bf16.mxu0 0
        %544 = vmatpush1.bf16.msra.mxu0 %v523
        %545 = vmatprep.subr.bf16.mxu0 0
        %546 = vmatpush1.bf16.msra.mxu0 %v524
        %547 = vmatprep.subr.bf16.mxu0 0
        %548 = vmatpush1.bf16.msra.mxu0 %v525
        %549 = vmatprep.subr.bf16.mxu0 0
        %550 = vmatpush1.bf16.msra.mxu0 %v526
        %551 = vmatprep.subr.bf16.mxu0 0
        %552 = vmatpush1.bf16.msra.mxu0 0
        %553 = vmatprep.subr.bf16.mxu0 0
        %554 = vmatpush1.bf16.msra.mxu0 0
        %555 = vmatprep.subr.bf16.mxu0 0
        %556 = vmatpush1.bf16.msra.mxu0 0
        %557 = vmatprep.subr.bf16.mxu0 0
        %558 = vmatpush1.bf16.msra.mxu0 0
        %559 = vmatprep.subr.bf16.mxu0 0
        %560 = vmatpush1.bf16.msra.mxu0 0
        %561 = vmatprep.subr.bf16.mxu0 0
        %562 = vmatpush1.bf16.msra.mxu0 0
        %563 = vmatprep.subr.bf16.mxu0 0
        %564 = vmatpush1.bf16.msra.mxu0 0
        %565 = vmatprep.subr.bf16.mxu0 0
        %566 = vmatpush1.bf16.msra.mxu0 0
        %567 = vmatprep.mubr.bf16.mxu0 0
        %568 = vmatmul.mubr.bf16.gmra.mrb[0].mxu0 %v470
        %v569 = vpop.f32.mrb[0].mxu0
        %v570 = vadd.f32 0.0, %v569
        %v571 = vpop.f32.mrb[0].mxu0
        %v572 = vpop.f32.mrb[0].mxu0
        %v573 = vadd.f32 0.0, %v572
        %v574 = vpop.f32.mrb[0].mxu0
        %575 = vdwg.mxu0
        %v576 = vadd.f32 %v468, %v570
        %v577 = vadd.f32 %v469, %v573
        %578 = vst [vmem:[%s297] sm:$0xff] %v576
        %579 = vst [vmem:[%s297 + $0x8] sm:$0xff] %v577
        %v580 = vld [vmem:[#allocation2] sm:$0xff]
        %v581 = vld [vmem:[#allocation2 + $0x8] sm:$0xff]
        %v582 = vrot.slane %v580, 4
        %v583 = vrot.slane %v581, 4
        %vm584 = vcmp.lt.s32.totalorder %v450, 4
        %v585 = vsel %vm584, %v582, %v583
        %v586 = vsel %vm584, %v583, %v582
        %s587 = scalar_lea.vmem %s5, 16
        %v588 = vld [vmem:[%s587] sm:$0xff]
        %v589 = vld [vmem:[%s587 + $0x8] sm:$0xff]
        %591 = vset.pattern.permute.xlu0 0
        %592 = vperm.xlu0 %591, %v588
        %v593 = vpop.permute.xlu0 %592
        %596 = vset.pattern.permute.xlu0 0
        %597 = vperm.xlu0 %596, %v589
        %v598 = vpop.permute.xlu0 %597
        %v600 = vmul.f32 %v586, %v593
        %v601 = vmul.f32 %v585, %v598
        %v602 = vld [vmem:[%s297] sm:$0xff]
        %v603 = vld [vmem:[%s297 + $0x8] sm:$0xff]
        %v604 = vpack.c.bf16 %v601, %v600
        %s605 = scalar_lea.vmem [#allocation3], 64
        %v606 = vld [vmem:[%s605] sm:$0xf]
        %v607 = vld [vmem:[%s605 + $0x4] sm:$0xf]
        %v608 = vld [vmem:[%s605 + $0x8] sm:$0xf]
        %v609 = vld [vmem:[%s605 + $0xc] sm:$0xf]
        %v610 = vld [vmem:[%s605 + $0x10] sm:$0xf]
        %v611 = vld [vmem:[%s605 + $0x14] sm:$0xf]
        %v612 = vld [vmem:[%s605 + $0x18] sm:$0xf]
        %v613 = vld [vmem:[%s605 + $0x1c] sm:$0xf]
        %v614 = vld [vmem:[%s605 + $0x20] sm:$0xf]
        %v615 = vld [vmem:[%s605 + $0x24] sm:$0xf]
        %v616 = vld [vmem:[%s605 + $0x28] sm:$0xf]
        %v617 = vld [vmem:[%s605 + $0x2c] sm:$0xf]
        %v618 = vld [vmem:[%s605 + $0x30] sm:$0xf]
        %v619 = vld [vmem:[%s605 + $0x34] sm:$0xf]
        %v620 = vld [vmem:[%s605 + $0x38] sm:$0xf]
        %v621 = vld [vmem:[%s605 + $0x3c] sm:$0xf]
        %v638 = vunpack.c.l.b16 %v606
        %v639 = vunpack.c.l.b16 %v607
        %v640 = vunpack.c.l.b16 %v608
        %v641 = vunpack.c.l.b16 %v609
        %v642 = vunpack.c.l.b16 %v610
        %v643 = vunpack.c.l.b16 %v611
        %v644 = vunpack.c.l.b16 %v612
        %v645 = vunpack.c.l.b16 %v613
        %v646 = vunpack.c.l.b16 %v614
        %v647 = vunpack.c.l.b16 %v615
        %v648 = vunpack.c.l.b16 %v616
        %v649 = vunpack.c.l.b16 %v617
        %v650 = vunpack.c.l.b16 %v618
        %v651 = vunpack.c.l.b16 %v619
        %v652 = vunpack.c.l.b16 %v620
        %v653 = vunpack.c.l.b16 %v621
        %v654 = vpack.c.b16 %v639, %v638
        %v655 = vpack.c.b16 %v641, %v640
        %v656 = vpack.c.b16 %v643, %v642
        %v657 = vpack.c.b16 %v645, %v644
        %v658 = vpack.c.b16 %v647, %v646
        %v659 = vpack.c.b16 %v649, %v648
        %v660 = vpack.c.b16 %v651, %v650
        %v661 = vpack.c.b16 %v653, %v652
        %670 = vmatprep.subr.bf16.mxu0 0
        %671 = vmatpush1.bf16.msra.mxu0 %v654
        %672 = vmatprep.subr.bf16.mxu0 0
        %673 = vmatpush1.bf16.msra.mxu0 %v655
        %674 = vmatprep.subr.bf16.mxu0 0
        %675 = vmatpush1.bf16.msra.mxu0 %v656
        %676 = vmatprep.subr.bf16.mxu0 0
        %677 = vmatpush1.bf16.msra.mxu0 %v657
        %678 = vmatprep.subr.bf16.mxu0 0
        %679 = vmatpush1.bf16.msra.mxu0 %v658
        %680 = vmatprep.subr.bf16.mxu0 0
        %681 = vmatpush1.bf16.msra.mxu0 %v659
        %682 = vmatprep.subr.bf16.mxu0 0
        %683 = vmatpush1.bf16.msra.mxu0 %v660
        %684 = vmatprep.subr.bf16.mxu0 0
        %685 = vmatpush1.bf16.msra.mxu0 %v661
        %686 = vmatprep.subr.bf16.mxu0 0
        %687 = vmatpush1.bf16.msra.mxu0 0
        %688 = vmatprep.subr.bf16.mxu0 0
        %689 = vmatpush1.bf16.msra.mxu0 0
        %690 = vmatprep.subr.bf16.mxu0 0
        %691 = vmatpush1.bf16.msra.mxu0 0
        %692 = vmatprep.subr.bf16.mxu0 0
        %693 = vmatpush1.bf16.msra.mxu0 0
        %694 = vmatprep.subr.bf16.mxu0 0
        %695 = vmatpush1.bf16.msra.mxu0 0
        %696 = vmatprep.subr.bf16.mxu0 0
        %697 = vmatpush1.bf16.msra.mxu0 0
        %698 = vmatprep.subr.bf16.mxu0 0
        %699 = vmatpush1.bf16.msra.mxu0 0
        %700 = vmatprep.subr.bf16.mxu0 0
        %701 = vmatpush1.bf16.msra.mxu0 0
        %702 = vmatprep.mubr.bf16.mxu0 0
        %703 = vmatmul.mubr.bf16.gmra.mrb[0].mxu0 %v604
        %v704 = vpop.f32.mrb[0].mxu0
        %v705 = vadd.f32 0.0, %v704
        %v706 = vpop.f32.mrb[0].mxu0
        %v707 = vpop.f32.mrb[0].mxu0
        %v708 = vadd.f32 0.0, %v707
        %v709 = vpop.f32.mrb[0].mxu0
        %710 = vdwg.mxu0
        %v711 = vadd.f32 %v602, %v705
        %v712 = vadd.f32 %v603, %v708
        %713 = vst [vmem:[%s297] sm:$0xff] %v711
        %714 = vst [vmem:[%s297 + $0x8] sm:$0xff] %v712
        %v715 = vld [vmem:[#allocation2] sm:$0xff]
        %v716 = vld [vmem:[#allocation2 + $0x8] sm:$0xff]
        %v717 = vrot.slane %v715, 5
        %v718 = vrot.slane %v716, 5
        %vm719 = vcmp.lt.s32.totalorder %v450, 3
        %v720 = vsel %vm719, %v717, %v718
        %v721 = vsel %vm719, %v718, %v717
        %s722 = scalar_lea.vmem %s5, 32
        %v723 = vld [vmem:[%s722] sm:$0xff]
        %v724 = vld [vmem:[%s722 + $0x8] sm:$0xff]
        %726 = vset.pattern.permute.xlu0 0
        %727 = vperm.xlu0 %726, %v723
        %v728 = vpop.permute.xlu0 %727
        %731 = vset.pattern.permute.xlu0 0
        %732 = vperm.xlu0 %731, %v724
        %v733 = vpop.permute.xlu0 %732
        %v735 = vmul.f32 %v721, %v728
        %v736 = vmul.f32 %v720, %v733
        %v737 = vld [vmem:[%s297] sm:$0xff]
        %v738 = vld [vmem:[%s297 + $0x8] sm:$0xff]
        %v739 = vpack.c.bf16 %v736, %v735
        %s740 = scalar_lea.vmem [#allocation3], 128
        %v741 = vld [vmem:[%s740] sm:$0xf]
        %v742 = vld [vmem:[%s740 + $0x4] sm:$0xf]
        %v743 = vld [vmem:[%s740 + $0x8] sm:$0xf]
        %v744 = vld [vmem:[%s740 + $0xc] sm:$0xf]
        %v745 = vld [vmem:[%s740 + $0x10] sm:$0xf]
        %v746 = vld [vmem:[%s740 + $0x14] sm:$0xf]
        %v747 = vld [vmem:[%s740 + $0x18] sm:$0xf]
        %v748 = vld [vmem:[%s740 + $0x1c] sm:$0xf]
        %v749 = vld [vmem:[%s740 + $0x20] sm:$0xf]
        %v750 = vld [vmem:[%s740 + $0x24] sm:$0xf]
        %v751 = vld [vmem:[%s740 + $0x28] sm:$0xf]
        %v752 = vld [vmem:[%s740 + $0x2c] sm:$0xf]
        %v753 = vld [vmem:[%s740 + $0x30] sm:$0xf]
        %v754 = vld [vmem:[%s740 + $0x34] sm:$0xf]
        %v755 = vld [vmem:[%s740 + $0x38] sm:$0xf]
        %v756 = vld [vmem:[%s740 + $0x3c] sm:$0xf]
        %v773 = vunpack.c.l.b16 %v741
        %v774 = vunpack.c.l.b16 %v742
        %v775 = vunpack.c.l.b16 %v743
        %v776 = vunpack.c.l.b16 %v744
        %v777 = vunpack.c.l.b16 %v745
        %v778 = vunpack.c.l.b16 %v746
        %v779 = vunpack.c.l.b16 %v747
        %v780 = vunpack.c.l.b16 %v748
        %v781 = vunpack.c.l.b16 %v749
        %v782 = vunpack.c.l.b16 %v750
        %v783 = vunpack.c.l.b16 %v751
        %v784 = vunpack.c.l.b16 %v752
        %v785 = vunpack.c.l.b16 %v753
        %v786 = vunpack.c.l.b16 %v754
        %v787 = vunpack.c.l.b16 %v755
        %v788 = vunpack.c.l.b16 %v756
        %v789 = vpack.c.b16 %v774, %v773
        %v790 = vpack.c.b16 %v776, %v775
        %v791 = vpack.c.b16 %v778, %v777
        %v792 = vpack.c.b16 %v780, %v779
        %v793 = vpack.c.b16 %v782, %v781
        %v794 = vpack.c.b16 %v784, %v783
        %v795 = vpack.c.b16 %v786, %v785
        %v796 = vpack.c.b16 %v788, %v787
        %805 = vmatprep.subr.bf16.mxu0 0
        %806 = vmatpush1.bf16.msra.mxu0 %v789
        %807 = vmatprep.subr.bf16.mxu0 0
        %808 = vmatpush1.bf16.msra.mxu0 %v790
        %809 = vmatprep.subr.bf16.mxu0 0
        %810 = vmatpush1.bf16.msra.mxu0 %v791
        %811 = vmatprep.subr.bf16.mxu0 0
        %812 = vmatpush1.bf16.msra.mxu0 %v792
        %813 = vmatprep.subr.bf16.mxu0 0
        %814 = vmatpush1.bf16.msra.mxu0 %v793
        %815 = vmatprep.subr.bf16.mxu0 0
        %816 = vmatpush1.bf16.msra.mxu0 %v794
        %817 = vmatprep.subr.bf16.mxu0 0
        %818 = vmatpush1.bf16.msra.mxu0 %v795
        %819 = vmatprep.subr.bf16.mxu0 0
        %820 = vmatpush1.bf16.msra.mxu0 %v796
        %821 = vmatprep.subr.bf16.mxu0 0
        %822 = vmatpush1.bf16.msra.mxu0 0
        %823 = vmatprep.subr.bf16.mxu0 0
        %824 = vmatpush1.bf16.msra.mxu0 0
        %825 = vmatprep.subr.bf16.mxu0 0
        %826 = vmatpush1.bf16.msra.mxu0 0
        %827 = vmatprep.subr.bf16.mxu0 0
        %828 = vmatpush1.bf16.msra.mxu0 0
        %829 = vmatprep.subr.bf16.mxu0 0
        %830 = vmatpush1.bf16.msra.mxu0 0
        %831 = vmatprep.subr.bf16.mxu0 0
        %832 = vmatpush1.bf16.msra.mxu0 0
        %833 = vmatprep.subr.bf16.mxu0 0
        %834 = vmatpush1.bf16.msra.mxu0 0
        %835 = vmatprep.subr.bf16.mxu0 0
        %836 = vmatpush1.bf16.msra.mxu0 0
        %837 = vmatprep.mubr.bf16.mxu0 0
        %838 = vmatmul.mubr.bf16.gmra.mrb[0].mxu0 %v739
        %v839 = vpop.f32.mrb[0].mxu0
        %v840 = vadd.f32 0.0, %v839
        %v841 = vpop.f32.mrb[0].mxu0
        %v842 = vpop.f32.mrb[0].mxu0
        %v843 = vadd.f32 0.0, %v842
        %v844 = vpop.f32.mrb[0].mxu0
        %845 = vdwg.mxu0
        %v846 = vadd.f32 %v737, %v840
        %v847 = vadd.f32 %v738, %v843
        %848 = vst [vmem:[%s297] sm:$0xff] %v846
        %849 = vst [vmem:[%s297 + $0x8] sm:$0xff] %v847
        %v850 = vld [vmem:[#allocation2] sm:$0xff]
        %v851 = vld [vmem:[#allocation2 + $0x8] sm:$0xff]
        %v852 = vrot.slane %v850, 7
        %v853 = vrot.slane %v851, 7
        %vm854 = vcmp.lt.s32.totalorder %v450, 1
        %v855 = vsel %vm854, %v852, %v853
        %v856 = vsel %vm854, %v853, %v852
        %s857 = scalar_lea.vmem %s5, 48
        %v858 = vld [vmem:[%s857] sm:$0xff]
        %v859 = vld [vmem:[%s857 + $0x8] sm:$0xff]
        %861 = vset.pattern.permute.xlu0 0
        %862 = vperm.xlu0 %861, %v858
        %v863 = vpop.permute.xlu0 %862
        %866 = vset.pattern.permute.xlu0 0
        %867 = vperm.xlu0 %866, %v859
        %v868 = vpop.permute.xlu0 %867
        %v870 = vmul.f32 %v856, %v863
        %v871 = vmul.f32 %v855, %v868
        %v872 = vld [vmem:[%s297] sm:$0xff]
        %v873 = vld [vmem:[%s297 + $0x8] sm:$0xff]
        %v874 = vpack.c.bf16 %v871, %v870
        %s875 = scalar_lea.vmem [#allocation3], 192
        %v876 = vld [vmem:[%s875] sm:$0xf]
        %v877 = vld [vmem:[%s875 + $0x4] sm:$0xf]
        %v878 = vld [vmem:[%s875 + $0x8] sm:$0xf]
        %v879 = vld [vmem:[%s875 + $0xc] sm:$0xf]
        %v880 = vld [vmem:[%s875 + $0x10] sm:$0xf]
        %v881 = vld [vmem:[%s875 + $0x14] sm:$0xf]
        %v882 = vld [vmem:[%s875 + $0x18] sm:$0xf]
        %v883 = vld [vmem:[%s875 + $0x1c] sm:$0xf]
        %v884 = vld [vmem:[%s875 + $0x20] sm:$0xf]
        %v885 = vld [vmem:[%s875 + $0x24] sm:$0xf]
        %v886 = vld [vmem:[%s875 + $0x28] sm:$0xf]
        %v887 = vld [vmem:[%s875 + $0x2c] sm:$0xf]
        %v888 = vld [vmem:[%s875 + $0x30] sm:$0xf]
        %v889 = vld [vmem:[%s875 + $0x34] sm:$0xf]
        %v890 = vld [vmem:[%s875 + $0x38] sm:$0xf]
        %v891 = vld [vmem:[%s875 + $0x3c] sm:$0xf]
        %v908 = vunpack.c.l.b16 %v876
        %v909 = vunpack.c.l.b16 %v877
        %v910 = vunpack.c.l.b16 %v878
        %v911 = vunpack.c.l.b16 %v879
        %v912 = vunpack.c.l.b16 %v880
        %v913 = vunpack.c.l.b16 %v881
        %v914 = vunpack.c.l.b16 %v882
        %v915 = vunpack.c.l.b16 %v883
        %v916 = vunpack.c.l.b16 %v884
        %v917 = vunpack.c.l.b16 %v885
        %v918 = vunpack.c.l.b16 %v886
        %v919 = vunpack.c.l.b16 %v887
        %v920 = vunpack.c.l.b16 %v888
        %v921 = vunpack.c.l.b16 %v889
        %v922 = vunpack.c.l.b16 %v890
        %v923 = vunpack.c.l.b16 %v891
        %v924 = vpack.c.b16 %v909, %v908
        %v925 = vpack.c.b16 %v911, %v910
        %v926 = vpack.c.b16 %v913, %v912
        %v927 = vpack.c.b16 %v915, %v914
        %v928 = vpack.c.b16 %v917, %v916
        %v929 = vpack.c.b16 %v919, %v918
        %v930 = vpack.c.b16 %v921, %v920
        %v931 = vpack.c.b16 %v923, %v922
        %940 = vmatprep.subr.bf16.mxu0 0
        %941 = vmatpush1.bf16.msra.mxu0 %v924
        %942 = vmatprep.subr.bf16.mxu0 0
        %943 = vmatpush1.bf16.msra.mxu0 %v925
        %944 = vmatprep.subr.bf16.mxu0 0
        %945 = vmatpush1.bf16.msra.mxu0 %v926
        %946 = vmatprep.subr.bf16.mxu0 0
        %947 = vmatpush1.bf16.msra.mxu0 %v927
        %948 = vmatprep.subr.bf16.mxu0 0
        %949 = vmatpush1.bf16.msra.mxu0 %v928
        %950 = vmatprep.subr.bf16.mxu0 0
        %951 = vmatpush1.bf16.msra.mxu0 %v929
        %952 = vmatprep.subr.bf16.mxu0 0
        %953 = vmatpush1.bf16.msra.mxu0 %v930
        %954 = vmatprep.subr.bf16.mxu0 0
        %955 = vmatpush1.bf16.msra.mxu0 %v931
        %956 = vmatprep.subr.bf16.mxu0 0
        %957 = vmatpush1.bf16.msra.mxu0 0
        %958 = vmatprep.subr.bf16.mxu0 0
        %959 = vmatpush1.bf16.msra.mxu0 0
        %960 = vmatprep.subr.bf16.mxu0 0
        %961 = vmatpush1.bf16.msra.mxu0 0
        %962 = vmatprep.subr.bf16.mxu0 0
        %963 = vmatpush1.bf16.msra.mxu0 0
        %964 = vmatprep.subr.bf16.mxu0 0
        %965 = vmatpush1.bf16.msra.mxu0 0
        %966 = vmatprep.subr.bf16.mxu0 0
        %967 = vmatpush1.bf16.msra.mxu0 0
        %968 = vmatprep.subr.bf16.mxu0 0
        %969 = vmatpush1.bf16.msra.mxu0 0
        %970 = vmatprep.subr.bf16.mxu0 0
        %971 = vmatpush1.bf16.msra.mxu0 0
        %972 = vmatprep.mubr.bf16.mxu0 0
        %973 = vmatmul.mubr.bf16.gmra.mrb[0].mxu0 %v874
        %v974 = vpop.f32.mrb[0].mxu0
        %v975 = vadd.f32 0.0, %v974
        %v976 = vpop.f32.mrb[0].mxu0
        %v977 = vpop.f32.mrb[0].mxu0
        %v978 = vadd.f32 0.0, %v977
        %v979 = vpop.f32.mrb[0].mxu0
        %980 = vdwg.mxu0
        %v981 = vadd.f32 %v872, %v975
        %v982 = vadd.f32 %v873, %v978
        %983 = vst [vmem:[%s297] sm:$0xff] %v981
        %984 = vst [vmem:[%s297 + $0x8] sm:$0xff] %v982
        %v985 = vld [vmem:[#allocation2] sm:$0xff]
        %v986 = vld [vmem:[#allocation2 + $0x8] sm:$0xff]
        %v987 = vld [vmem:[%s297] sm:$0xff]
        %v988 = vld [vmem:[%s297 + $0x8] sm:$0xff]
        %v989 = vpack.c.bf16 %v986, %v985
        %s990 = scalar_lea.vmem [#allocation3], 256
        %v991 = vld [vmem:[%s990] sm:$0xf]
        %v992 = vld [vmem:[%s990 + $0x4] sm:$0xf]
        %v993 = vld [vmem:[%s990 + $0x8] sm:$0xf]
        %v994 = vld [vmem:[%s990 + $0xc] sm:$0xf]
        %v995 = vld [vmem:[%s990 + $0x10] sm:$0xf]
        %v996 = vld [vmem:[%s990 + $0x14] sm:$0xf]
        %v997 = vld [vmem:[%s990 + $0x18] sm:$0xf]
        %v998 = vld [vmem:[%s990 + $0x1c] sm:$0xf]
        %v999 = vld [vmem:[%s990 + $0x20] sm:$0xf]
        %v1000 = vld [vmem:[%s990 + $0x24] sm:$0xf]
        %v1001 = vld [vmem:[%s990 + $0x28] sm:$0xf]
        %v1002 = vld [vmem:[%s990 + $0x2c] sm:$0xf]
        %v1003 = vld [vmem:[%s990 + $0x30] sm:$0xf]
        %v1004 = vld [vmem:[%s990 + $0x34] sm:$0xf]
        %v1005 = vld [vmem:[%s990 + $0x38] sm:$0xf]
        %v1006 = vld [vmem:[%s990 + $0x3c] sm:$0xf]
        %v1023 = vunpack.c.l.b16 %v991
        %v1024 = vunpack.c.l.b16 %v992
        %v1025 = vunpack.c.l.b16 %v993
        %v1026 = vunpack.c.l.b16 %v994
        %v1027 = vunpack.c.l.b16 %v995
        %v1028 = vunpack.c.l.b16 %v996
        %v1029 = vunpack.c.l.b16 %v997
        %v1030 = vunpack.c.l.b16 %v998
        %v1031 = vunpack.c.l.b16 %v999
        %v1032 = vunpack.c.l.b16 %v1000
        %v1033 = vunpack.c.l.b16 %v1001
        %v1034 = vunpack.c.l.b16 %v1002
        %v1035 = vunpack.c.l.b16 %v1003
        %v1036 = vunpack.c.l.b16 %v1004
        %v1037 = vunpack.c.l.b16 %v1005
        %v1038 = vunpack.c.l.b16 %v1006
        %v1039 = vpack.c.b16 %v1024, %v1023
        %v1040 = vpack.c.b16 %v1026, %v1025
        %v1041 = vpack.c.b16 %v1028, %v1027
        %v1042 = vpack.c.b16 %v1030, %v1029
        %v1043 = vpack.c.b16 %v1032, %v1031
        %v1044 = vpack.c.b16 %v1034, %v1033
        %v1045 = vpack.c.b16 %v1036, %v1035
        %v1046 = vpack.c.b16 %v1038, %v1037
        %1055 = vmatprep.subr.bf16.mxu0 0
        %1056 = vmatpush1.bf16.msra.mxu0 %v1039
        %1057 = vmatprep.subr.bf16.mxu0 0
        %1058 = vmatpush1.bf16.msra.mxu0 %v1040
        %1059 = vmatprep.subr.bf16.mxu0 0
        %1060 = vmatpush1.bf16.msra.mxu0 %v1041
        %1061 = vmatprep.subr.bf16.mxu0 0
        %1062 = vmatpush1.bf16.msra.mxu0 %v1042
        %1063 = vmatprep.subr.bf16.mxu0 0
        %1064 = vmatpush1.bf16.msra.mxu0 %v1043
        %1065 = vmatprep.subr.bf16.mxu0 0
        %1066 = vmatpush1.bf16.msra.mxu0 %v1044
        %1067 = vmatprep.subr.bf16.mxu0 0
        %1068 = vmatpush1.bf16.msra.mxu0 %v1045
        %1069 = vmatprep.subr.bf16.mxu0 0
        %1070 = vmatpush1.bf16.msra.mxu0 %v1046
        %1071 = vmatprep.subr.bf16.mxu0 0
        %1072 = vmatpush1.bf16.msra.mxu0 0
        %1073 = vmatprep.subr.bf16.mxu0 0
        %1074 = vmatpush1.bf16.msra.mxu0 0
        %1075 = vmatprep.subr.bf16.mxu0 0
        %1076 = vmatpush1.bf16.msra.mxu0 0
        %1077 = vmatprep.subr.bf16.mxu0 0
        %1078 = vmatpush1.bf16.msra.mxu0 0
        %1079 = vmatprep.subr.bf16.mxu0 0
        %1080 = vmatpush1.bf16.msra.mxu0 0
        %1081 = vmatprep.subr.bf16.mxu0 0
        %1082 = vmatpush1.bf16.msra.mxu0 0
        %1083 = vmatprep.subr.bf16.mxu0 0
        %1084 = vmatpush1.bf16.msra.mxu0 0
        %1085 = vmatprep.subr.bf16.mxu0 0
        %1086 = vmatpush1.bf16.msra.mxu0 0
        %1087 = vmatprep.mubr.bf16.mxu0 0
        %1088 = vmatmul.mubr.bf16.gmra.mrb[0].mxu0 %v989
        %v1089 = vpop.f32.mrb[0].mxu0
        %v1090 = vadd.f32 0.0, %v1089
        %v1091 = vpop.f32.mrb[0].mxu0
        %v1092 = vpop.f32.mrb[0].mxu0
        %v1093 = vadd.f32 0.0, %v1092
        %v1094 = vpop.f32.mrb[0].mxu0
        %1095 = vdwg.mxu0
        %v1096 = vadd.f32 %v987, %v1090
        %v1097 = vadd.f32 %v988, %v1093
        %1098 = vst [vmem:[%s297] sm:$0xff] %v1096
        %1099 = vst [vmem:[%s297 + $0x8] sm:$0xff] %v1097
        %v1100 = vld [vmem:[#allocation2] sm:$0xff]
        %v1101 = vld [vmem:[#allocation2 + $0x8] sm:$0xff]
        %v1102 = vrot.slane %v1100, 1
        %v1103 = vrot.slane %v1101, 1
        %vm1104 = vcmp.lt.s32.totalorder %v450, 7
        %v1105 = vsel %vm1104, %v1102, %v1103
        %v1106 = vsel %vm1104, %v1103, %v1102
        %s1107 = scalar_lea.vmem %s5, 80
        %v1108 = vld [vmem:[%s1107] sm:$0xff]
        %v1109 = vld [vmem:[%s1107 + $0x8] sm:$0xff]
        %1111 = vset.pattern.permute.xlu0 0
        %1112 = vperm.xlu0 %1111, %v1108
        %v1113 = vpop.permute.xlu0 %1112
        %1116 = vset.pattern.permute.xlu0 0
        %1117 = vperm.xlu0 %1116, %v1109
        %v1118 = vpop.permute.xlu0 %1117
        %v1120 = vmul.f32 %v1105, %v1113
        %v1121 = vmul.f32 %v1106, %v1118
        %v1122 = vld [vmem:[%s297] sm:$0xff]
        %v1123 = vld [vmem:[%s297 + $0x8] sm:$0xff]
        %v1124 = vpack.c.bf16 %v1121, %v1120
        %s1125 = scalar_lea.vmem [#allocation3], 320
        %v1126 = vld [vmem:[%s1125] sm:$0xf]
        %v1127 = vld [vmem:[%s1125 + $0x4] sm:$0xf]
        %v1128 = vld [vmem:[%s1125 + $0x8] sm:$0xf]
        %v1129 = vld [vmem:[%s1125 + $0xc] sm:$0xf]
        %v1130 = vld [vmem:[%s1125 + $0x10] sm:$0xf]
        %v1131 = vld [vmem:[%s1125 + $0x14] sm:$0xf]
        %v1132 = vld [vmem:[%s1125 + $0x18] sm:$0xf]
        %v1133 = vld [vmem:[%s1125 + $0x1c] sm:$0xf]
        %v1134 = vld [vmem:[%s1125 + $0x20] sm:$0xf]
        %v1135 = vld [vmem:[%s1125 + $0x24] sm:$0xf]
        %v1136 = vld [vmem:[%s1125 + $0x28] sm:$0xf]
        %v1137 = vld [vmem:[%s1125 + $0x2c] sm:$0xf]
        %v1138 = vld [vmem:[%s1125 + $0x30] sm:$0xf]
        %v1139 = vld [vmem:[%s1125 + $0x34] sm:$0xf]
        %v1140 = vld [vmem:[%s1125 + $0x38] sm:$0xf]
        %v1141 = vld [vmem:[%s1125 + $0x3c] sm:$0xf]
        %v1158 = vunpack.c.l.b16 %v1126
        %v1159 = vunpack.c.l.b16 %v1127
        %v1160 = vunpack.c.l.b16 %v1128
        %v1161 = vunpack.c.l.b16 %v1129
        %v1162 = vunpack.c.l.b16 %v1130
        %v1163 = vunpack.c.l.b16 %v1131
        %v1164 = vunpack.c.l.b16 %v1132
        %v1165 = vunpack.c.l.b16 %v1133
        %v1166 = vunpack.c.l.b16 %v1134
        %v1167 = vunpack.c.l.b16 %v1135
        %v1168 = vunpack.c.l.b16 %v1136
        %v1169 = vunpack.c.l.b16 %v1137
        %v1170 = vunpack.c.l.b16 %v1138
        %v1171 = vunpack.c.l.b16 %v1139
        %v1172 = vunpack.c.l.b16 %v1140
        %v1173 = vunpack.c.l.b16 %v1141
        %v1174 = vpack.c.b16 %v1159, %v1158
        %v1175 = vpack.c.b16 %v1161, %v1160
        %v1176 = vpack.c.b16 %v1163, %v1162
        %v1177 = vpack.c.b16 %v1165, %v1164
        %v1178 = vpack.c.b16 %v1167, %v1166
        %v1179 = vpack.c.b16 %v1169, %v1168
        %v1180 = vpack.c.b16 %v1171, %v1170
        %v1181 = vpack.c.b16 %v1173, %v1172
        %1190 = vmatprep.subr.bf16.mxu0 0
        %1191 = vmatpush1.bf16.msra.mxu0 %v1174
        %1192 = vmatprep.subr.bf16.mxu0 0
        %1193 = vmatpush1.bf16.msra.mxu0 %v1175
        %1194 = vmatprep.subr.bf16.mxu0 0
        %1195 = vmatpush1.bf16.msra.mxu0 %v1176
        %1196 = vmatprep.subr.bf16.mxu0 0
        %1197 = vmatpush1.bf16.msra.mxu0 %v1177
        %1198 = vmatprep.subr.bf16.mxu0 0
        %1199 = vmatpush1.bf16.msra.mxu0 %v1178
        %1200 = vmatprep.subr.bf16.mxu0 0
        %1201 = vmatpush1.bf16.msra.mxu0 %v1179
        %1202 = vmatprep.subr.bf16.mxu0 0
        %1203 = vmatpush1.bf16.msra.mxu0 %v1180
        %1204 = vmatprep.subr.bf16.mxu0 0
        %1205 = vmatpush1.bf16.msra.mxu0 %v1181
        %1206 = vmatprep.subr.bf16.mxu0 0
        %1207 = vmatpush1.bf16.msra.mxu0 0
        %1208 = vmatprep.subr.bf16.mxu0 0
        %1209 = vmatpush1.bf16.msra.mxu0 0
        %1210 = vmatprep.subr.bf16.mxu0 0
        %1211 = vmatpush1.bf16.msra.mxu0 0
        %1212 = vmatprep.subr.bf16.mxu0 0
        %1213 = vmatpush1.bf16.msra.mxu0 0
        %1214 = vmatprep.subr.bf16.mxu0 0
        %1215 = vmatpush1.bf16.msra.mxu0 0
        %1216 = vmatprep.subr.bf16.mxu0 0
        %1217 = vmatpush1.bf16.msra.mxu0 0
        %1218 = vmatprep.subr.bf16.mxu0 0
        %1219 = vmatpush1.bf16.msra.mxu0 0
        %1220 = vmatprep.subr.bf16.mxu0 0
        %1221 = vmatpush1.bf16.msra.mxu0 0
        %1222 = vmatprep.mubr.bf16.mxu0 0
        %1223 = vmatmul.mubr.bf16.gmra.mrb[0].mxu0 %v1124
        %v1224 = vpop.f32.mrb[0].mxu0
        %v1225 = vadd.f32 0.0, %v1224
        %v1226 = vpop.f32.mrb[0].mxu0
        %v1227 = vpop.f32.mrb[0].mxu0
        %v1228 = vadd.f32 0.0, %v1227
        %v1229 = vpop.f32.mrb[0].mxu0
        %1230 = vdwg.mxu0
        %v1231 = vadd.f32 %v1122, %v1225
        %v1232 = vadd.f32 %v1123, %v1228
        %1233 = vst [vmem:[%s297] sm:$0xff] %v1231
        %1234 = vst [vmem:[%s297 + $0x8] sm:$0xff] %v1232
        %v1235 = vld [vmem:[#allocation2] sm:$0xff]
        %v1236 = vld [vmem:[#allocation2 + $0x8] sm:$0xff]
        %v1237 = vrot.slane %v1235, 3
        %v1238 = vrot.slane %v1236, 3
        %v1239 = vsel %vm451, %v1237, %v1238
        %v1240 = vsel %vm451, %v1238, %v1237
        %s1241 = scalar_lea.vmem %s5, 96
        %v1242 = vld [vmem:[%s1241] sm:$0xff]
        %v1243 = vld [vmem:[%s1241 + $0x8] sm:$0xff]
        %1245 = vset.pattern.permute.xlu0 0
        %1246 = vperm.xlu0 %1245, %v1242
        %v1247 = vpop.permute.xlu0 %1246
        %1250 = vset.pattern.permute.xlu0 0
        %1251 = vperm.xlu0 %1250, %v1243
        %v1252 = vpop.permute.xlu0 %1251
        %v1254 = vmul.f32 %v1239, %v1247
        %v1255 = vmul.f32 %v1240, %v1252
        %v1256 = vld [vmem:[%s297] sm:$0xff]
        %v1257 = vld [vmem:[%s297 + $0x8] sm:$0xff]
        %v1258 = vpack.c.bf16 %v1255, %v1254
        %s1259 = scalar_lea.vmem [#allocation3], 384
        %v1260 = vld [vmem:[%s1259] sm:$0xf]
        %v1261 = vld [vmem:[%s1259 + $0x4] sm:$0xf]
        %v1262 = vld [vmem:[%s1259 + $0x8] sm:$0xf]
        %v1263 = vld [vmem:[%s1259 + $0xc] sm:$0xf]
        %v1264 = vld [vmem:[%s1259 + $0x10] sm:$0xf]
        %v1265 = vld [vmem:[%s1259 + $0x14] sm:$0xf]
        %v1266 = vld [vmem:[%s1259 + $0x18] sm:$0xf]
        %v1267 = vld [vmem:[%s1259 + $0x1c] sm:$0xf]
        %v1268 = vld [vmem:[%s1259 + $0x20] sm:$0xf]
        %v1269 = vld [vmem:[%s1259 + $0x24] sm:$0xf]
        %v1270 = vld [vmem:[%s1259 + $0x28] sm:$0xf]
        %v1271 = vld [vmem:[%s1259 + $0x2c] sm:$0xf]
        %v1272 = vld [vmem:[%s1259 + $0x30] sm:$0xf]
        %v1273 = vld [vmem:[%s1259 + $0x34] sm:$0xf]
        %v1274 = vld [vmem:[%s1259 + $0x38] sm:$0xf]
        %v1275 = vld [vmem:[%s1259 + $0x3c] sm:$0xf]
        %v1292 = vunpack.c.l.b16 %v1260
        %v1293 = vunpack.c.l.b16 %v1261
        %v1294 = vunpack.c.l.b16 %v1262
        %v1295 = vunpack.c.l.b16 %v1263
        %v1296 = vunpack.c.l.b16 %v1264
        %v1297 = vunpack.c.l.b16 %v1265
        %v1298 = vunpack.c.l.b16 %v1266
        %v1299 = vunpack.c.l.b16 %v1267
        %v1300 = vunpack.c.l.b16 %v1268
        %v1301 = vunpack.c.l.b16 %v1269
        %v1302 = vunpack.c.l.b16 %v1270
        %v1303 = vunpack.c.l.b16 %v1271
        %v1304 = vunpack.c.l.b16 %v1272
        %v1305 = vunpack.c.l.b16 %v1273
        %v1306 = vunpack.c.l.b16 %v1274
        %v1307 = vunpack.c.l.b16 %v1275
        %v1308 = vpack.c.b16 %v1293, %v1292
        %v1309 = vpack.c.b16 %v1295, %v1294
        %v1310 = vpack.c.b16 %v1297, %v1296
        %v1311 = vpack.c.b16 %v1299, %v1298
        %v1312 = vpack.c.b16 %v1301, %v1300
        %v1313 = vpack.c.b16 %v1303, %v1302
        %v1314 = vpack.c.b16 %v1305, %v1304
        %v1315 = vpack.c.b16 %v1307, %v1306
        %1324 = vmatprep.subr.bf16.mxu0 0
        %1325 = vmatpush1.bf16.msra.mxu0 %v1308
        %1326 = vmatprep.subr.bf16.mxu0 0
        %1327 = vmatpush1.bf16.msra.mxu0 %v1309
        %1328 = vmatprep.subr.bf16.mxu0 0
        %1329 = vmatpush1.bf16.msra.mxu0 %v1310
        %1330 = vmatprep.subr.bf16.mxu0 0
        %1331 = vmatpush1.bf16.msra.mxu0 %v1311
        %1332 = vmatprep.subr.bf16.mxu0 0
        %1333 = vmatpush1.bf16.msra.mxu0 %v1312
        %1334 = vmatprep.subr.bf16.mxu0 0
        %1335 = vmatpush1.bf16.msra.mxu0 %v1313
        %1336 = vmatprep.subr.bf16.mxu0 0
        %1337 = vmatpush1.bf16.msra.mxu0 %v1314
        %1338 = vmatprep.subr.bf16.mxu0 0
        %1339 = vmatpush1.bf16.msra.mxu0 %v1315
        %1340 = vmatprep.subr.bf16.mxu0 0
        %1341 = vmatpush1.bf16.msra.mxu0 0
        %1342 = vmatprep.subr.bf16.mxu0 0
        %1343 = vmatpush1.bf16.msra.mxu0 0
        %1344 = vmatprep.subr.bf16.mxu0 0
        %1345 = vmatpush1.bf16.msra.mxu0 0
        %1346 = vmatprep.subr.bf16.mxu0 0
        %1347 = vmatpush1.bf16.msra.mxu0 0
        %1348 = vmatprep.subr.bf16.mxu0 0
        %1349 = vmatpush1.bf16.msra.mxu0 0
        %1350 = vmatprep.subr.bf16.mxu0 0
        %1351 = vmatpush1.bf16.msra.mxu0 0
        %1352 = vmatprep.subr.bf16.mxu0 0
        %1353 = vmatpush1.bf16.msra.mxu0 0
        %1354 = vmatprep.subr.bf16.mxu0 0
        %1355 = vmatpush1.bf16.msra.mxu0 0
        %1356 = vmatprep.mubr.bf16.mxu0 0
        %1357 = vmatmul.mubr.bf16.gmra.mrb[0].mxu0 %v1258
        %v1358 = vpop.f32.mrb[0].mxu0
        %v1359 = vadd.f32 0.0, %v1358
        %v1360 = vpop.f32.mrb[0].mxu0
        %v1361 = vpop.f32.mrb[0].mxu0
        %v1362 = vadd.f32 0.0, %v1361
        %v1363 = vpop.f32.mrb[0].mxu0
        %1364 = vdwg.mxu0
        %v1365 = vadd.f32 %v1256, %v1359
        %v1366 = vadd.f32 %v1257, %v1362
        %1367 = vst [vmem:[%s297] sm:$0xff] %v1365
        %1368 = vst [vmem:[%s297 + $0x8] sm:$0xff] %v1366
        %v1369 = vld [vmem:[#allocation2] sm:$0xff]
        %v1370 = vld [vmem:[#allocation2 + $0x8] sm:$0xff]
        %v1371 = vrot.slane %v1369, 4
        %v1372 = vrot.slane %v1370, 4
        %v1373 = vsel %vm584, %v1371, %v1372
        %v1374 = vsel %vm584, %v1372, %v1371
        %s1375 = scalar_lea.vmem %s5, 112
        %v1376 = vld [vmem:[%s1375] sm:$0xff]
        %v1377 = vld [vmem:[%s1375 + $0x8] sm:$0xff]
        %1379 = vset.pattern.permute.xlu0 0
        %1380 = vperm.xlu0 %1379, %v1376
        %v1381 = vpop.permute.xlu0 %1380
        %1384 = vset.pattern.permute.xlu0 0
        %1385 = vperm.xlu0 %1384, %v1377
        %v1386 = vpop.permute.xlu0 %1385
        %v1388 = vmul.f32 %v1373, %v1381
        %v1389 = vmul.f32 %v1374, %v1386
        %v1390 = vld [vmem:[%s297] sm:$0xff]
        %v1391 = vld [vmem:[%s297 + $0x8] sm:$0xff]
        %v1392 = vpack.c.bf16 %v1389, %v1388
        %s1393 = scalar_lea.vmem [#allocation3], 448
        %v1394 = vld [vmem:[%s1393] sm:$0xf]
        %v1395 = vld [vmem:[%s1393 + $0x4] sm:$0xf]
        %v1396 = vld [vmem:[%s1393 + $0x8] sm:$0xf]
        %v1397 = vld [vmem:[%s1393 + $0xc] sm:$0xf]
        %v1398 = vld [vmem:[%s1393 + $0x10] sm:$0xf]
        %v1399 = vld [vmem:[%s1393 + $0x14] sm:$0xf]
        %v1400 = vld [vmem:[%s1393 + $0x18] sm:$0xf]
        %v1401 = vld [vmem:[%s1393 + $0x1c] sm:$0xf]
        %v1402 = vld [vmem:[%s1393 + $0x20] sm:$0xf]
        %v1403 = vld [vmem:[%s1393 + $0x24] sm:$0xf]
        %v1404 = vld [vmem:[%s1393 + $0x28] sm:$0xf]
        %v1405 = vld [vmem:[%s1393 + $0x2c] sm:$0xf]
        %v1406 = vld [vmem:[%s1393 + $0x30] sm:$0xf]
        %v1407 = vld [vmem:[%s1393 + $0x34] sm:$0xf]
        %v1408 = vld [vmem:[%s1393 + $0x38] sm:$0xf]
        %v1409 = vld [vmem:[%s1393 + $0x3c] sm:$0xf]
        %v1426 = vunpack.c.l.b16 %v1394
        %v1427 = vunpack.c.l.b16 %v1395
        %v1428 = vunpack.c.l.b16 %v1396
        %v1429 = vunpack.c.l.b16 %v1397
        %v1430 = vunpack.c.l.b16 %v1398
        %v1431 = vunpack.c.l.b16 %v1399
        %v1432 = vunpack.c.l.b16 %v1400
        %v1433 = vunpack.c.l.b16 %v1401
        %v1434 = vunpack.c.l.b16 %v1402
        %v1435 = vunpack.c.l.b16 %v1403
        %v1436 = vunpack.c.l.b16 %v1404
        %v1437 = vunpack.c.l.b16 %v1405
        %v1438 = vunpack.c.l.b16 %v1406
        %v1439 = vunpack.c.l.b16 %v1407
        %v1440 = vunpack.c.l.b16 %v1408
        %v1441 = vunpack.c.l.b16 %v1409
        %v1442 = vpack.c.b16 %v1427, %v1426
        %v1443 = vpack.c.b16 %v1429, %v1428
        %v1444 = vpack.c.b16 %v1431, %v1430
        %v1445 = vpack.c.b16 %v1433, %v1432
        %v1446 = vpack.c.b16 %v1435, %v1434
        %v1447 = vpack.c.b16 %v1437, %v1436
        %v1448 = vpack.c.b16 %v1439, %v1438
        %v1449 = vpack.c.b16 %v1441, %v1440
        %1458 = vmatprep.subr.bf16.mxu0 0
        %1459 = vmatpush1.bf16.msra.mxu0 %v1442
        %1460 = vmatprep.subr.bf16.mxu0 0
        %1461 = vmatpush1.bf16.msra.mxu0 %v1443
        %1462 = vmatprep.subr.bf16.mxu0 0
        %1463 = vmatpush1.bf16.msra.mxu0 %v1444
        %1464 = vmatprep.subr.bf16.mxu0 0
        %1465 = vmatpush1.bf16.msra.mxu0 %v1445
        %1466 = vmatprep.subr.bf16.mxu0 0
        %1467 = vmatpush1.bf16.msra.mxu0 %v1446
        %1468 = vmatprep.subr.bf16.mxu0 0
        %1469 = vmatpush1.bf16.msra.mxu0 %v1447
        %1470 = vmatprep.subr.bf16.mxu0 0
        %1471 = vmatpush1.bf16.msra.mxu0 %v1448
        %1472 = vmatprep.subr.bf16.mxu0 0
        %1473 = vmatpush1.bf16.msra.mxu0 %v1449
        %1474 = vmatprep.subr.bf16.mxu0 0
        %1475 = vmatpush1.bf16.msra.mxu0 0
        %1476 = vmatprep.subr.bf16.mxu0 0
        %1477 = vmatpush1.bf16.msra.mxu0 0
        %1478 = vmatprep.subr.bf16.mxu0 0
        %1479 = vmatpush1.bf16.msra.mxu0 0
        %1480 = vmatprep.subr.bf16.mxu0 0
        %1481 = vmatpush1.bf16.msra.mxu0 0
        %1482 = vmatprep.subr.bf16.mxu0 0
        %1483 = vmatpush1.bf16.msra.mxu0 0
        %1484 = vmatprep.subr.bf16.mxu0 0
        %1485 = vmatpush1.bf16.msra.mxu0 0
        %1486 = vmatprep.subr.bf16.mxu0 0
        %1487 = vmatpush1.bf16.msra.mxu0 0
        %1488 = vmatprep.subr.bf16.mxu0 0
        %1489 = vmatpush1.bf16.msra.mxu0 0
        %1490 = vmatprep.mubr.bf16.mxu0 0
        %1491 = vmatmul.mubr.bf16.gmra.mrb[0].mxu0 %v1392
        %v1492 = vpop.f32.mrb[0].mxu0
        %v1493 = vadd.f32 0.0, %v1492
        %v1494 = vpop.f32.mrb[0].mxu0
        %v1495 = vpop.f32.mrb[0].mxu0
        %v1496 = vadd.f32 0.0, %v1495
        %v1497 = vpop.f32.mrb[0].mxu0
        %1498 = vdwg.mxu0
        %v1499 = vadd.f32 %v1390, %v1493
        %v1500 = vadd.f32 %v1391, %v1496
        %1501 = vst [vmem:[%s297] sm:$0xff] %v1499
        %1502 = vst [vmem:[%s297 + $0x8] sm:$0xff] %v1500
        %v1503 = vld [vmem:[#allocation2] sm:$0xff]
        %v1504 = vld [vmem:[#allocation2 + $0x8] sm:$0xff]
        %v1505 = vrot.slane %v1503, 5
        %v1506 = vrot.slane %v1504, 5
        %v1507 = vsel %vm719, %v1505, %v1506
        %v1508 = vsel %vm719, %v1506, %v1505
        %s1509 = scalar_lea.vmem %s5, 128
        %v1510 = vld [vmem:[%s1509] sm:$0xff]
        %v1511 = vld [vmem:[%s1509 + $0x8] sm:$0xff]
        %1513 = vset.pattern.permute.xlu0 0
        %1514 = vperm.xlu0 %1513, %v1510
        %v1515 = vpop.permute.xlu0 %1514
        %1518 = vset.pattern.permute.xlu0 0
        %1519 = vperm.xlu0 %1518, %v1511
        %v1520 = vpop.permute.xlu0 %1519
        %v1522 = vmul.f32 %v1507, %v1515
        %v1523 = vmul.f32 %v1508, %v1520
        %v1524 = vld [vmem:[%s297] sm:$0xff]
        %v1525 = vld [vmem:[%s297 + $0x8] sm:$0xff]
        %v1526 = vpack.c.bf16 %v1523, %v1522
        %s1527 = scalar_lea.vmem [#allocation3], 512
        %v1528 = vld [vmem:[%s1527] sm:$0xf]
        %v1529 = vld [vmem:[%s1527 + $0x4] sm:$0xf]
        %v1530 = vld [vmem:[%s1527 + $0x8] sm:$0xf]
        %v1531 = vld [vmem:[%s1527 + $0xc] sm:$0xf]
        %v1532 = vld [vmem:[%s1527 + $0x10] sm:$0xf]
        %v1533 = vld [vmem:[%s1527 + $0x14] sm:$0xf]
        %v1534 = vld [vmem:[%s1527 + $0x18] sm:$0xf]
        %v1535 = vld [vmem:[%s1527 + $0x1c] sm:$0xf]
        %v1536 = vld [vmem:[%s1527 + $0x20] sm:$0xf]
        %v1537 = vld [vmem:[%s1527 + $0x24] sm:$0xf]
        %v1538 = vld [vmem:[%s1527 + $0x28] sm:$0xf]
        %v1539 = vld [vmem:[%s1527 + $0x2c] sm:$0xf]
        %v1540 = vld [vmem:[%s1527 + $0x30] sm:$0xf]
        %v1541 = vld [vmem:[%s1527 + $0x34] sm:$0xf]
        %v1542 = vld [vmem:[%s1527 + $0x38] sm:$0xf]
        %v1543 = vld [vmem:[%s1527 + $0x3c] sm:$0xf]
        %v1560 = vunpack.c.l.b16 %v1528
        %v1561 = vunpack.c.l.b16 %v1529
        %v1562 = vunpack.c.l.b16 %v1530
        %v1563 = vunpack.c.l.b16 %v1531
        %v1564 = vunpack.c.l.b16 %v1532
        %v1565 = vunpack.c.l.b16 %v1533
        %v1566 = vunpack.c.l.b16 %v1534
        %v1567 = vunpack.c.l.b16 %v1535
        %v1568 = vunpack.c.l.b16 %v1536
        %v1569 = vunpack.c.l.b16 %v1537
        %v1570 = vunpack.c.l.b16 %v1538
        %v1571 = vunpack.c.l.b16 %v1539
        %v1572 = vunpack.c.l.b16 %v1540
        %v1573 = vunpack.c.l.b16 %v1541
        %v1574 = vunpack.c.l.b16 %v1542
        %v1575 = vunpack.c.l.b16 %v1543
        %v1576 = vpack.c.b16 %v1561, %v1560
        %v1577 = vpack.c.b16 %v1563, %v1562
        %v1578 = vpack.c.b16 %v1565, %v1564
        %v1579 = vpack.c.b16 %v1567, %v1566
        %v1580 = vpack.c.b16 %v1569, %v1568
        %v1581 = vpack.c.b16 %v1571, %v1570
        %v1582 = vpack.c.b16 %v1573, %v1572
        %v1583 = vpack.c.b16 %v1575, %v1574
        %1592 = vmatprep.subr.bf16.mxu0 0
        %1593 = vmatpush1.bf16.msra.mxu0 %v1576
        %1594 = vmatprep.subr.bf16.mxu0 0
        %1595 = vmatpush1.bf16.msra.mxu0 %v1577
        %1596 = vmatprep.subr.bf16.mxu0 0
        %1597 = vmatpush1.bf16.msra.mxu0 %v1578
        %1598 = vmatprep.subr.bf16.mxu0 0
        %1599 = vmatpush1.bf16.msra.mxu0 %v1579
        %1600 = vmatprep.subr.bf16.mxu0 0
        %1601 = vmatpush1.bf16.msra.mxu0 %v1580
        %1602 = vmatprep.subr.bf16.mxu0 0
        %1603 = vmatpush1.bf16.msra.mxu0 %v1581
        %1604 = vmatprep.subr.bf16.mxu0 0
        %1605 = vmatpush1.bf16.msra.mxu0 %v1582
        %1606 = vmatprep.subr.bf16.mxu0 0
        %1607 = vmatpush1.bf16.msra.mxu0 %v1583
        %1608 = vmatprep.subr.bf16.mxu0 0
        %1609 = vmatpush1.bf16.msra.mxu0 0
        %1610 = vmatprep.subr.bf16.mxu0 0
        %1611 = vmatpush1.bf16.msra.mxu0 0
        %1612 = vmatprep.subr.bf16.mxu0 0
        %1613 = vmatpush1.bf16.msra.mxu0 0
        %1614 = vmatprep.subr.bf16.mxu0 0
        %1615 = vmatpush1.bf16.msra.mxu0 0
        %1616 = vmatprep.subr.bf16.mxu0 0
        %1617 = vmatpush1.bf16.msra.mxu0 0
        %1618 = vmatprep.subr.bf16.mxu0 0
        %1619 = vmatpush1.bf16.msra.mxu0 0
        %1620 = vmatprep.subr.bf16.mxu0 0
        %1621 = vmatpush1.bf16.msra.mxu0 0
        %1622 = vmatprep.subr.bf16.mxu0 0
        %1623 = vmatpush1.bf16.msra.mxu0 0
        %1624 = vmatprep.mubr.bf16.mxu0 0
        %1625 = vmatmul.mubr.bf16.gmra.mrb[0].mxu0 %v1526
        %v1626 = vpop.f32.mrb[0].mxu0
        %v1627 = vadd.f32 0.0, %v1626
        %v1628 = vpop.f32.mrb[0].mxu0
        %v1629 = vpop.f32.mrb[0].mxu0
        %v1630 = vadd.f32 0.0, %v1629
        %v1631 = vpop.f32.mrb[0].mxu0
        %1632 = vdwg.mxu0
        %v1633 = vadd.f32 %v1524, %v1627
        %v1634 = vadd.f32 %v1525, %v1630
        %1635 = vst [vmem:[%s297] sm:$0xff] %v1633
        %1636 = vst [vmem:[%s297 + $0x8] sm:$0xff] %v1634
        %s1637 = sand.u32 %s165, 1
        %s1638 = scalar_lea.sflag [#allocation5], %s1637
        %s1639 = sand.u32 %s165, 1
        %s1640 = smul.addr %s1639, 8
        %s1641 = scalar_lea.vmem [#allocation6], %s1640
        %s1642 = sand.u32 %s191, 1
        %s1643 = scalar_lea.sflag [#allocation8], %s1642
        %s1644 = sand.u32 %s191, 1
        %s1645 = smul.addr %s1644, 16
        %s1646 = scalar_lea.vmem [#allocation7], %s1645
        // Predicated region
        $region49: #{tpu_custom_call.1} parent=43 // pred_check
          %p1647 = pneg %p175
        $region50: #{tpu_custom_call.1} parent=43 // pred_check_branch
          %1649 = sbr.rel (%p1647) target = $region52
        $region51: #{tpu_custom_call.1} parent=43 // pred_region
          %s1651 = ssub.s32 128, 128
          %1652 = vsyncadd %s1638, %s1651
          %s1653 = smul.addr %s26, 2
          %s1654 = smul.addr %s1653, 64
          %s1655 = scalar_lea.hbm %s6, %s1654
          %s1656 = sshll.u32 %s1641, 4
          %s1657 = int_to_ptr.vmem [resolvable:$true] %s1656
          %1662 = dma.vmem_to_hbm [thread:$0]  %s1657, 128, %s1655, %s1638, 64, 64, 4
        $region52: #{tpu_custom_call.1} parent=43 // pred_fallthru
          _
        // Predicated region
        $region53: #{tpu_custom_call.1} parent=43 // pred_check
          %p1663 = pneg %p201
        $region54: #{tpu_custom_call.1} parent=43 // pred_check_branch
          %1665 = sbr.rel (%p1663) target = $region56
        $region55: #{tpu_custom_call.1} parent=43 // pred_region
          %s1667 = ssub.s32 256, 256
          %1668 = vsyncadd %s1643, %s1667
          %s1669 = smul.addr %s26, 2
          %s1670 = smul.addr %s1669, 128
          %s1671 = scalar_lea.hbm %s7, %s1670
          %s1672 = sshll.u32 %s1646, 4
          %s1673 = int_to_ptr.vmem [resolvable:$true] %s1672
          %1678 = dma.vmem_to_hbm [thread:$0]  %s1673, 256, %s1671, %s1643, 128, 128, 8
        $region56: #{tpu_custom_call.1} parent=43 // pred_fallthru
          _
      $region44: #{tpu_custom_call.1} parent=5 // pred_fallthru
        _
      %p1679 = scmp.le.s32.totalorder 2, %s21
      // Predicated region
      $region57: #{tpu_custom_call.1} parent=5 // pred_check
        %p1680 = pneg %p1679
      $region58: #{tpu_custom_call.1} parent=5 // pred_check_branch
        %1682 = sbr.rel (%p1680) target = $region60
      $region59: #{tpu_custom_call.1} parent=5 // pred_region
        %s1683 = ssub.s32 %s21, 2
        // Predicated region
        $region61: #{tpu_custom_call.1} parent=59 // pred_check
          %p1684 = pneg %p181
        $region62: #{tpu_custom_call.1} parent=59 // pred_check_branch
          %1686 = sbr.rel (%p1684) target = $region64
        $region63: #{tpu_custom_call.1} parent=59 // pred_region
          %s1687 = sand.u32 %s166, 1
          %s1688 = scalar_lea.sflag [#allocation5], %s1687
          %s1689 = sand.u32 %s166, 1
          %s1690 = smul.addr %s1689, 8
          %s1691 = scalar_lea.vmem [#allocation6], %s1690
          %1692 = dma.done %s1688, 128
        $region64: #{tpu_custom_call.1} parent=59 // pred_fallthru
          _
        // Predicated region
        $region65: #{tpu_custom_call.1} parent=59 // pred_check
          %p1693 = pneg %p207
        $region66: #{tpu_custom_call.1} parent=59 // pred_check_branch
          %1695 = sbr.rel (%p1693) target = $region68
        $region67: #{tpu_custom_call.1} parent=59 // pred_region
          %s1696 = sand.u32 %s192, 1
          %s1697 = scalar_lea.sflag [#allocation8], %s1696
          %s1698 = sand.u32 %s192, 1
          %s1699 = smul.addr %s1698, 16
          %s1700 = scalar_lea.vmem [#allocation7], %s1699
          %1701 = dma.done %s1697, 256
        $region68: #{tpu_custom_call.1} parent=59 // pred_fallthru
          _
      $region60: #{tpu_custom_call.1} parent=5 // pred_fallthru
        _
    $region6: #{tpu_custom_call.1} parent=1 // loop_footer
      %s25 = sadd.s32 1, %s21
    $region7: #{tpu_custom_call.1} parent=1 // loop_footer_branch
      %20 = sbr.rel target = $region3
    $region8: #{tpu_custom_call.1} parent=1 // loop_exit
      _
    %1702 = vsyncpa [#allocation4], 1
    %s1703 = scalar_lea.sflag [#allocation4], 1
    %1704 = vsyncpa %s1703, 1
    %1705 = vsyncpa [#allocation5], 1
    %s1706 = scalar_lea.sflag [#allocation5], 1
    %1707 = vsyncpa %s1706, 1
    %1708 = vsyncpa [#allocation8], 1
    %s1709 = scalar_lea.sflag [#allocation8], 1
    %1710 = vsyncpa %s1709, 1

</llo_original>
